<compile_context>
chip_gen: v5e
topology: v5e:2x2
jax: 0.10.0
libtpu: 0.0.40
codegen_flags: <defaults>
</compile_context>

<pallas_src>
import functools
import math

import jax
import jax.numpy as jnp
from jax.experimental import pallas as pl
from jax.experimental.pallas import tpu as pltpu


# ---------------------------------------------------------------------------
# Fused Pallas kernel: stride-1 2x2 conv + bias + activation (per image).
#
#   x_ref : (1, Hi, Wi, Cin)   bf16   (Hi = Ho + 1, Wi = Wo + 1)
#   w_ref : (4, Cin, Cout)     bf16   tap-major weight, tap index = dh*2 + dw
#   b_ref : (1, Cout)          f32
#   o_ref : (1, Ho, Wo, Cout)  bf16 / f32
#
#   out[a, b, :] = act( bias + sum_{dh,dw in {0,1}} x[a+dh, b+dw, :] @ w[2dh+dw] )
#
# The taps are shifted slices of the VMEM-resident input block, so no im2col
# patch matrix ever touches HBM.
# ---------------------------------------------------------------------------
def _conv2x2_kernel(x_ref, w_ref, b_ref, o_ref, *, act):
    ho, wo, cout = o_ref.shape[1], o_ref.shape[2], o_ref.shape[3]
    cin = x_ref.shape[3]
    bias = b_ref[...].astype(jnp.float32)                       # (1, Cout)

    def row(a, carry):
        acc = jnp.zeros((wo, cout), jnp.float32)
        for dh in range(2):                                     # static, unrolled
            for dw in range(2):
                xs = x_ref[0, pl.ds(a + dh, 1), pl.ds(dw, wo), :]   # (1, wo, cin)
                xs = xs.reshape(wo, cin)                        # drop leading 1
                acc = acc + jnp.dot(xs, w_ref[dh * 2 + dw],
                                    preferred_element_type=jnp.float32)
        y = acc + bias
        if act == "relu":
            y = jnp.maximum(y, 0.0)
        elif act == "tanh":
            y = jnp.tanh(y)                                     # EUP
        o_ref[0, pl.ds(a, 1), :, :] = y.reshape(1, wo, cout).astype(o_ref.dtype)
        return carry

    jax.lax.fori_loop(0, ho, row, 0)


def conv2x2_pallas(x, w_taps, b, *, act, out_dtype):
    """x: (N, Hi, Wi, Cin) bf16, w_taps: (4, Cin, Cout) bf16, b: (Cout,) f32."""
    n, hi, wi, cin = x.shape
    cout = w_taps.shape[2]
    ho, wo = hi - 1, wi - 1
    b2 = b.reshape(1, cout).astype(jnp.float32)

    # Explicit VMEM budget (v7x: 64 MiB physical / 32 MiB scoped default):
    # double-buffered input + output blocks, single-buffered weight + bias.
    in_bytes = hi * wi * cin * 2
    out_bytes = ho * wo * cout * jnp.dtype(out_dtype).itemsize
    w_bytes = 4 * cin * cout * 2
    need = 2 * in_bytes + 2 * out_bytes + w_bytes + (1 << 20)
    compiler_kwargs = {}
    if need > (30 << 20):
        # TODO(synk): band the H axis (1-row halo) instead of raising the limit
        # once per-image blocks outgrow VMEM at large spatial sizes.
        compiler_kwargs["vmem_limit_bytes"] = int(min(need + (4 << 20), 60 << 20))

    kernel = functools.partial(_conv2x2_kernel, act=act)
    return pl.pallas_call(
        kernel,
        out_shape=jax.ShapeDtypeStruct((n, ho, wo, cout), out_dtype),
        grid_spec=pltpu.PrefetchScalarGridSpec(
            num_scalar_prefetch=0,
            grid=(n,),                                  # one image per grid step
            in_specs=[
                pl.BlockSpec((1, hi, wi, cin), lambda i: (i, 0, 0, 0)),
                pl.BlockSpec((4, cin, cout), lambda i: (0, 0, 0),
                             pipeline_mode=pl.Buffered(1)),      # resident weight
                pl.BlockSpec((1, cout), lambda i: (0, 0),
                             pipeline_mode=pl.Buffered(1)),      # resident bias
            ],
            out_specs=pl.BlockSpec((1, ho, wo, cout), lambda i: (i, 0, 0, 0)),
        ),
        compiler_params=pltpu.CompilerParams(
            dimension_semantics=("parallel",), **compiler_kwargs),
    )(x, w_taps, b2)


# ---------------------------------------------------------------------------
# Layer wrappers (weight rearrangement + cheap layout prep in plain JAX).
# ---------------------------------------------------------------------------
def _conv_weight_to_taps(w):
    """Conv2d weight (Cout, Cin, 4, 4) -> (4, 4*Cin, Cout), tap = dh*2+dw,
    in-channels phase-major (r, s, cin) to match the phase-rearranged input."""
    co, ci, _, _ = w.shape
    wr = w.reshape(co, ci, 2, 2, 2, 2)            # (co, ci, dh, r, dw, s); kh=2dh+r
    wr = jnp.transpose(wr, (2, 4, 3, 5, 1, 0))    # (dh, dw, r, s, ci, co)
    return wr.reshape(4, 4 * ci, co)


def _deconv_weight_to_taps(w):
    """ConvTranspose2d weight (Cin, Cout, 4, 4) -> (4, Cin, 4*Cout), tap = dh*2+dw,
    out-channels phase-major (r, s, cout); kernel tap used is kh = 3 - r - 2*dh."""
    ci, co, _, _ = w.shape
    wf = w[:, :, ::-1, ::-1]
    wr = wf.reshape(ci, co, 2, 2, 2, 2)           # (ci, co, dh, r, dw, s)
    wr = jnp.transpose(wr, (2, 4, 0, 3, 5, 1))    # (dh, dw, ci, r, s, co)
    return wr.reshape(4, ci, 4 * co)


def conv4x4_s2(x, w, b, *, act, out_dtype):
    """PyTorch Conv2d(k=4, s=2, p=1) + activation.  x: (N, H, W, C) bf16 NHWC."""
    n, h, wd, c = x.shape
    assert h % 2 == 0 and wd % 2 == 0
    xp = jnp.pad(x, ((0, 0), (1, 1), (1, 1), (0, 0)))
    hp, wp = h + 2, wd + 2
    # 2x2 phase rearrangement: (N, hp/2, wp/2, 4C), channel index = (r*2+s)*C + c.
    xr = xp.reshape(n, hp // 2, 2, wp // 2, 2, c)
    xr = jnp.transpose(xr, (0, 1, 3, 2, 4, 5)).reshape(n, hp // 2, wp // 2, 4 * c)
    w_taps = _conv_weight_to_taps(w).astype(jnp.bfloat16)
    return conv2x2_pallas(xr, w_taps, b, act=act, out_dtype=out_dtype)


def deconv4x4_s2(x, w, b, *, act, out_dtype):
    """PyTorch ConvTranspose2d(k=4, s=2, p=1) + activation.  x: (N,H,W,Cin) bf16."""
    n, h, wd, _ = x.shape
    co = w.shape[1]
    xp = jnp.pad(x, ((0, 0), (1, 1), (1, 1), (0, 0)))
    w_taps = _deconv_weight_to_taps(w).astype(jnp.bfloat16)
    b4 = jnp.tile(b, 4)
    y = conv2x2_pallas(xp, w_taps, b4, act=act, out_dtype=out_dtype)   # (N,H+1,W+1,4*co)
    # Pixel shuffle with per-phase crop: out[2q+r, 2p+s] = y[q+r, p+s, (r, s)].
    # Channels leave the kernel phase-major, so this is slices + one transpose
    # (a single XLA fusion).
    # TODO(synk): fold the shuffle into the kernel's per-row store to save the pass.
    y = y.reshape(n, h + 1, wd + 1, 2, 2, co)
    yr = jnp.stack([y[:, 0:h, :, 0], y[:, 1:h + 1, :, 1]], axis=3)        # (n,h,W+1,r,s,co)
    yc = jnp.stack([yr[:, :, 0:wd, :, 0, :], yr[:, :, 1:wd + 1, :, 1, :]],
                   axis=4)                                                # (n,h,w,r,s,co)
    return jnp.transpose(yc, (0, 1, 3, 2, 4, 5)).reshape(n, 2 * h, 2 * wd, co)


# ---------------------------------------------------------------------------
# Generator parameters (deterministic init, PyTorch-style uniform bounds).
# ---------------------------------------------------------------------------
def init_params(key):
    ks = jax.random.split(key, 8)

    def u(k, shape, fan_in):
        bound = 1.0 / math.sqrt(fan_in)
        return jax.random.uniform(k, shape, jnp.float32, -bound, bound)

    return {
        "conv1_w": u(ks[0], (64, 3, 4, 4), 3 * 16),
        "conv1_b": u(ks[1], (64,), 3 * 16),
        "conv2_w": u(ks[2], (128, 64, 4, 4), 64 * 16),
        "conv2_b": u(ks[3], (128,), 64 * 16),
        "deconv1_w": u(ks[4], (128, 64, 4, 4), 64 * 16),
        "deconv1_b": u(ks[5], (64,), 64 * 16),
        "deconv2_w": u(ks[6], (64, 3, 4, 4), 3 * 16),
        "deconv2_b": u(ks[7], (3,), 3 * 16),
    }


def generator_forward(params, x_nchw):
    x = jnp.transpose(x_nchw, (0, 2, 3, 1)).astype(jnp.bfloat16)   # NHWC, bf16
    x = conv4x4_s2(x, params["conv1_w"], params["conv1_b"],
                   act="relu", out_dtype=jnp.bfloat16)
    x = conv4x4_s2(x, params["conv2_w"], params["conv2_b"],
                   act="relu", out_dtype=jnp.bfloat16)
    x = deconv4x4_s2(x, params["deconv1_w"], params["deconv1_b"],
                     act="relu", out_dtype=jnp.bfloat16)
    x = deconv4x4_s2(x, params["deconv2_w"], params["deconv2_b"],
                     act="tanh", out_dtype=jnp.float32)
    return jnp.transpose(x, (0, 3, 1, 2))


# Pure-JAX f32 reference (PyTorch semantics) for numerical validation.
def reference_forward(params, x_nchw):
    x = jnp.transpose(x_nchw, (0, 2, 3, 1))

    def conv(x, w, b):
        y = jax.lax.conv_general_dilated(
            x, jnp.transpose(w, (2, 3, 1, 0)), (2, 2), ((1, 1), (1, 1)),
            dimension_numbers=("NHWC", "HWIO", "NHWC"))
        return jax.nn.relu(y + b)

    def deconv(x, w, b, act):
        y = jax.lax.conv_general_dilated(
            x, jnp.transpose(w[:, :, ::-1, ::-1], (2, 3, 0, 1)), (1, 1),
            ((2, 2), (2, 2)), lhs_dilation=(2, 2),
            dimension_numbers=("NHWC", "HWIO", "NHWC"))
        y = y + b
        return jax.nn.relu(y) if act == "relu" else jnp.tanh(y)

    x = conv(x, params["conv1_w"], params["conv1_b"])
    x = conv(x, params["conv2_w"], params["conv2_b"])
    x = deconv(x, params["deconv1_w"], params["deconv1_b"], "relu")
    x = deconv(x, params["deconv2_w"], params["deconv2_b"], "tanh")
    return jnp.transpose(x, (0, 3, 1, 2))


if __name__ == "__main__":
    key = jax.random.PRNGKey(0)
    pkey, xkey = jax.random.split(key)
    params = init_params(pkey)
    x = jax.random.normal(xkey, (2, 3, 16, 16), jnp.float32)     # NCHW like PyTorch

    out = jax.block_until_ready(jax.jit(generator_forward)(params, x))
    ref = jax.block_until_ready(jax.jit(reference_forward)(params, x))

    assert out.shape == (2, 3, 16, 16), out.shape
    assert bool(jnp.all(jnp.isfinite(out)))
    assert bool(jnp.all(jnp.abs(out) <= 1.0 + 1e-6))             # tanh range
    max_err = float(jnp.max(jnp.abs(out - ref)))
    assert max_err < 5e-2, f"mismatch vs f32 reference: max abs err {max_err}"
    print("KERNEL_OK")
</pallas_src>

<mosaic_0001>
module attributes {stable_mosaic.version = 11 : i64} {
  func.func @_conv2x2_kernel(%arg0: i32, %arg1: memref<1x9x9x12xbf16, #tpu.memory_space<vmem>>, %arg2: memref<4x12x64xbf16, #tpu.memory_space<vmem>>, %arg3: memref<1x64xf32, #tpu.memory_space<vmem>>, %arg4: memref<1x8x8x64xbf16, #tpu.memory_space<vmem>>) attributes {dimension_semantics = [#tpu.dimension_semantics<parallel>], iteration_bounds = array<i64: 2>, scalar_prefetch = 0 : i64, scratch_operands = 0 : i64, tpu.core_type = #tpu.core_type<tc>, window_params = [{transform_indices = @transform_0, window_bounds = array<i64: 1, 9, 9, 12>}, {pipeline_mode = #tpu.pipeline_mode<synchronous>, transform_indices = @transform_1, window_bounds = array<i64: 4, 12, 64>}, {pipeline_mode = #tpu.pipeline_mode<synchronous>, transform_indices = @transform_2, window_bounds = array<i64: 1, 64>}, {transform_indices = @transform_3, window_bounds = array<i64: 1, 8, 8, 64>}]} {
    %c0 = arith.constant 0 : index
    %c0_0 = arith.constant 0 : index
    %0 = vector.load %arg3[%c0, %c0_0] : memref<1x64xf32, #tpu.memory_space<vmem>>, vector<1x64xf32>
    %c0_i32 = arith.constant 0 : i32
    %c8_i32 = arith.constant 8 : i32
    %1 = arith.addi %c0_i32, %c8_i32 : i32
    %c1_i32 = arith.constant 1 : i32
    scf.for %arg5 = %c0_i32 to %1 step %c1_i32  : i32 {
      %cst = arith.constant 0.000000e+00 : f32
      %2 = vector.broadcast %cst : f32 to vector<8x64xf32>
      %c0_i32_2 = arith.constant 0 : i32
      %3 = arith.addi %arg5, %c0_i32_2 : i32
      %c0_3 = arith.constant 0 : index
      %4 = arith.index_cast %3 : i32 to index
      %c0_4 = arith.constant 0 : index
      %c0_5 = arith.constant 0 : index
      %5 = vector.load %arg1[%c0_3, %4, %c0_4, %c0_5] : memref<1x9x9x12xbf16, #tpu.memory_space<vmem>>, vector<1x1x8x12xbf16>
      %6 = vector.shape_cast %5 : vector<1x1x8x12xbf16> to vector<1x8x12xbf16>
      %7 = vector.shape_cast %6 : vector<1x8x12xbf16> to vector<8x12xbf16>
      %c0_6 = arith.constant 0 : index
      %c0_7 = arith.constant 0 : index
      %c0_8 = arith.constant 0 : index
      %8 = vector.load %arg2[%c0_6, %c0_7, %c0_8] : memref<4x12x64xbf16, #tpu.memory_space<vmem>>, vector<1x12x64xbf16>
      %9 = vector.shape_cast %8 : vector<1x12x64xbf16> to vector<12x64xbf16>
      %cst_9 = arith.constant dense<0.000000e+00> : vector<8x64xf32>
      %10 = tpu.matmul %7, %9, %cst_9 {dimension_numbers = #tpu.dot_dimension_numbers<[1], [0], [0], [1], [0, 0, 1, 1], [], []>} : vector<8x12xbf16>, vector<12x64xbf16>, vector<8x64xf32> -> vector<8x64xf32>
      %11 = arith.addf %2, %10 : vector<8x64xf32>
      %c0_i32_10 = arith.constant 0 : i32
      %12 = arith.addi %arg5, %c0_i32_10 : i32
      %c0_11 = arith.constant 0 : index
      %13 = arith.index_cast %12 : i32 to index
      %c1 = arith.constant 1 : index
      %c0_12 = arith.constant 0 : index
      %14 = vector.load %arg1[%c0_11, %13, %c1, %c0_12] : memref<1x9x9x12xbf16, #tpu.memory_space<vmem>>, vector<1x1x8x12xbf16>
      %15 = vector.shape_cast %14 : vector<1x1x8x12xbf16> to vector<1x8x12xbf16>
      %16 = vector.shape_cast %15 : vector<1x8x12xbf16> to vector<8x12xbf16>
      %c1_13 = arith.constant 1 : index
      %c0_14 = arith.constant 0 : index
      %c0_15 = arith.constant 0 : index
      %17 = vector.load %arg2[%c1_13, %c0_14, %c0_15] : memref<4x12x64xbf16, #tpu.memory_space<vmem>>, vector<1x12x64xbf16>
      %18 = vector.shape_cast %17 : vector<1x12x64xbf16> to vector<12x64xbf16>
      %cst_16 = arith.constant dense<0.000000e+00> : vector<8x64xf32>
      %19 = tpu.matmul %16, %18, %cst_16 {dimension_numbers = #tpu.dot_dimension_numbers<[1], [0], [0], [1], [0, 0, 1, 1], [], []>} : vector<8x12xbf16>, vector<12x64xbf16>, vector<8x64xf32> -> vector<8x64xf32>
      %20 = arith.addf %11, %19 : vector<8x64xf32>
      %c1_i32_17 = arith.constant 1 : i32
      %21 = arith.addi %arg5, %c1_i32_17 : i32
      %c0_18 = arith.constant 0 : index
      %22 = arith.index_cast %21 : i32 to index
      %c0_19 = arith.constant 0 : index
      %c0_20 = arith.constant 0 : index
      %23 = vector.load %arg1[%c0_18, %22, %c0_19, %c0_20] : memref<1x9x9x12xbf16, #tpu.memory_space<vmem>>, vector<1x1x8x12xbf16>
      %24 = vector.shape_cast %23 : vector<1x1x8x12xbf16> to vector<1x8x12xbf16>
      %25 = vector.shape_cast %24 : vector<1x8x12xbf16> to vector<8x12xbf16>
      %c2 = arith.constant 2 : index
      %c0_21 = arith.constant 0 : index
      %c0_22 = arith.constant 0 : index
      %26 = vector.load %arg2[%c2, %c0_21, %c0_22] : memref<4x12x64xbf16, #tpu.memory_space<vmem>>, vector<1x12x64xbf16>
      %27 = vector.shape_cast %26 : vector<1x12x64xbf16> to vector<12x64xbf16>
      %cst_23 = arith.constant dense<0.000000e+00> : vector<8x64xf32>
      %28 = tpu.matmul %25, %27, %cst_23 {dimension_numbers = #tpu.dot_dimension_numbers<[1], [0], [0], [1], [0, 0, 1, 1], [], []>} : vector<8x12xbf16>, vector<12x64xbf16>, vector<8x64xf32> -> vector<8x64xf32>
      %29 = arith.addf %20, %28 : vector<8x64xf32>
      %c1_i32_24 = arith.constant 1 : i32
      %30 = arith.addi %arg5, %c1_i32_24 : i32
      %c0_25 = arith.constant 0 : index
      %31 = arith.index_cast %30 : i32 to index
      %c1_26 = arith.constant 1 : index
      %c0_27 = arith.constant 0 : index
      %32 = vector.load %arg1[%c0_25, %31, %c1_26, %c0_27] : memref<1x9x9x12xbf16, #tpu.memory_space<vmem>>, vector<1x1x8x12xbf16>
      %33 = vector.shape_cast %32 : vector<1x1x8x12xbf16> to vector<1x8x12xbf16>
      %34 = vector.shape_cast %33 : vector<1x8x12xbf16> to vector<8x12xbf16>
      %c3 = arith.constant 3 : index
      %c0_28 = arith.constant 0 : index
      %c0_29 = arith.constant 0 : index
      %35 = vector.load %arg2[%c3, %c0_28, %c0_29] : memref<4x12x64xbf16, #tpu.memory_space<vmem>>, vector<1x12x64xbf16>
      %36 = vector.shape_cast %35 : vector<1x12x64xbf16> to vector<12x64xbf16>
      %cst_30 = arith.constant dense<0.000000e+00> : vector<8x64xf32>
      %37 = tpu.matmul %34, %36, %cst_30 {dimension_numbers = #tpu.dot_dimension_numbers<[1], [0], [0], [1], [0, 0, 1, 1], [], []>} : vector<8x12xbf16>, vector<12x64xbf16>, vector<8x64xf32> -> vector<8x64xf32>
      %38 = arith.addf %29, %37 : vector<8x64xf32>
      %39 = vector.broadcast %0 : vector<1x64xf32> to vector<8x64xf32>
      %40 = arith.addf %38, %39 : vector<8x64xf32>
      %cst_31 = arith.constant 0.000000e+00 : f32
      %41 = vector.broadcast %cst_31 : f32 to vector<8x64xf32>
      %42 = arith.maximumf %40, %41 : vector<8x64xf32>
      %43 = vector.shape_cast %42 : vector<8x64xf32> to vector<1x8x64xf32>
      %44 = arith.truncf %43 : vector<1x8x64xf32> to vector<1x8x64xbf16>
      %c0_32 = arith.constant 0 : index
      %45 = arith.index_cast %arg5 : i32 to index
      %c0_33 = arith.constant 0 : index
      %c0_34 = arith.constant 0 : index
      %46 = vector.load %arg4[%c0_32, %45, %c0_33, %c0_34] : memref<1x8x8x64xbf16, #tpu.memory_space<vmem>>, vector<1x1x8x64xbf16>
      %47 = vector.shape_cast %46 : vector<1x1x8x64xbf16> to vector<1x8x64xbf16>
      %48 = vector.shape_cast %44 : vector<1x8x64xbf16> to vector<1x1x8x64xbf16>
      tpu.vector_store %arg4[%c0_32, %45, %c0_33, %c0_34], %48 {strides = array<i32>} : memref<1x8x8x64xbf16, #tpu.memory_space<vmem>>, vector<1x1x8x64xbf16>,
    }
    %c8_i32_1 = arith.constant 8 : i32
    return
  }
  func.func @transform_0(%arg0: i32) -> (i32, i32, i32, i32) {
    %c0_i32 = arith.constant 0 : i32
    %c0_i32_0 = arith.constant 0 : i32
    %c0_i32_1 = arith.constant 0 : i32
    %c0_i32_2 = arith.constant 0 : i32
    return %arg0, %c0_i32, %c0_i32_0, %c0_i32_1 : i32, i32, i32, i32
  }
  func.func @transform_1(%arg0: i32) -> (i32, i32, i32) {
    %c0_i32 = arith.constant 0 : i32
    %c0_i32_0 = arith.constant 0 : i32
    %c0_i32_1 = arith.constant 0 : i32
    %c0_i32_2 = arith.constant 0 : i32
    return %c0_i32, %c0_i32_0, %c0_i32_1 : i32, i32, i32
  }
  func.func @transform_2(%arg0: i32) -> (i32, i32) {
    %c0_i32 = arith.constant 0 : i32
    %c0_i32_0 = arith.constant 0 : i32
    %c0_i32_1 = arith.constant 0 : i32
    return %c0_i32, %c0_i32_0 : i32, i32
  }
  func.func @transform_3(%arg0: i32) -> (i32, i32, i32, i32) {
    %c0_i32 = arith.constant 0 : i32
    %c0_i32_0 = arith.constant 0 : i32
    %c0_i32_1 = arith.constant 0 : i32
    %c0_i32_2 = arith.constant 0 : i32
    return %arg0, %c0_i32, %c0_i32_0, %c0_i32_1 : i32, i32, i32, i32
  }
}

module attributes {stable_mosaic.version = 11 : i64} {
  func.func @_conv2x2_kernel(%arg0: i32, %arg1: memref<1x5x5x256xbf16, #tpu.memory_space<vmem>>, %arg2: memref<4x256x128xbf16, #tpu.memory_space<vmem>>, %arg3: memref<1x128xf32, #tpu.memory_space<vmem>>, %arg4: memref<1x4x4x128xbf16, #tpu.memory_space<vmem>>) attributes {dimension_semantics = [#tpu.dimension_semantics<parallel>], iteration_bounds = array<i64: 2>, scalar_prefetch = 0 : i64, scratch_operands = 0 : i64, tpu.core_type = #tpu.core_type<tc>, window_params = [{transform_indices = @transform_0, window_bounds = array<i64: 1, 5, 5, 256>}, {pipeline_mode = #tpu.pipeline_mode<synchronous>, transform_indices = @transform_1, window_bounds = array<i64: 4, 256, 128>}, {pipeline_mode = #tpu.pipeline_mode<synchronous>, transform_indices = @transform_2, window_bounds = array<i64: 1, 128>}, {transform_indices = @transform_3, window_bounds = array<i64: 1, 4, 4, 128>}]} {
    %c0 = arith.constant 0 : index
    %c0_0 = arith.constant 0 : index
    %0 = vector.load %arg3[%c0, %c0_0] : memref<1x128xf32, #tpu.memory_space<vmem>>, vector<1x128xf32>
    %c0_i32 = arith.constant 0 : i32
    %c4_i32 = arith.constant 4 : i32
    %1 = arith.addi %c0_i32, %c4_i32 : i32
    %c1_i32 = arith.constant 1 : i32
    scf.for %arg5 = %c0_i32 to %1 step %c1_i32  : i32 {
      %cst = arith.constant 0.000000e+00 : f32
      %2 = vector.broadcast %cst : f32 to vector<4x128xf32>
      %c0_i32_2 = arith.constant 0 : i32
      %3 = arith.addi %arg5, %c0_i32_2 : i32
      %c0_3 = arith.constant 0 : index
      %4 = arith.index_cast %3 : i32 to index
      %c0_4 = arith.constant 0 : index
      %c0_5 = arith.constant 0 : index
      %5 = vector.load %arg1[%c0_3, %4, %c0_4, %c0_5] : memref<1x5x5x256xbf16, #tpu.memory_space<vmem>>, vector<1x1x4x256xbf16>
      %6 = vector.shape_cast %5 : vector<1x1x4x256xbf16> to vector<1x4x256xbf16>
      %7 = vector.shape_cast %6 : vector<1x4x256xbf16> to vector<4x256xbf16>
      %c0_6 = arith.constant 0 : index
      %c0_7 = arith.constant 0 : index
      %c0_8 = arith.constant 0 : index
      %8 = vector.load %arg2[%c0_6, %c0_7, %c0_8] : memref<4x256x128xbf16, #tpu.memory_space<vmem>>, vector<1x256x128xbf16>
      %9 = vector.shape_cast %8 : vector<1x256x128xbf16> to vector<256x128xbf16>
      %cst_9 = arith.constant dense<0.000000e+00> : vector<4x128xf32>
      %10 = tpu.matmul %7, %9, %cst_9 {dimension_numbers = #tpu.dot_dimension_numbers<[1], [0], [0], [1], [0, 0, 1, 1], [], []>} : vector<4x256xbf16>, vector<256x128xbf16>, vector<4x128xf32> -> vector<4x128xf32>
      %11 = arith.addf %2, %10 : vector<4x128xf32>
      %c0_i32_10 = arith.constant 0 : i32
      %12 = arith.addi %arg5, %c0_i32_10 : i32
      %c0_11 = arith.constant 0 : index
      %13 = arith.index_cast %12 : i32 to index
      %c1 = arith.constant 1 : index
      %c0_12 = arith.constant 0 : index
      %14 = vector.load %arg1[%c0_11, %13, %c1, %c0_12] : memref<1x5x5x256xbf16, #tpu.memory_space<vmem>>, vector<1x1x4x256xbf16>
      %15 = vector.shape_cast %14 : vector<1x1x4x256xbf16> to vector<1x4x256xbf16>
      %16 = vector.shape_cast %15 : vector<1x4x256xbf16> to vector<4x256xbf16>
      %c1_13 = arith.constant 1 : index
      %c0_14 = arith.constant 0 : index
      %c0_15 = arith.constant 0 : index
      %17 = vector.load %arg2[%c1_13, %c0_14, %c0_15] : memref<4x256x128xbf16, #tpu.memory_space<vmem>>, vector<1x256x128xbf16>
      %18 = vector.shape_cast %17 : vector<1x256x128xbf16> to vector<256x128xbf16>
      %cst_16 = arith.constant dense<0.000000e+00> : vector<4x128xf32>
      %19 = tpu.matmul %16, %18, %cst_16 {dimension_numbers = #tpu.dot_dimension_numbers<[1], [0], [0], [1], [0, 0, 1, 1], [], []>} : vector<4x256xbf16>, vector<256x128xbf16>, vector<4x128xf32> -> vector<4x128xf32>
      %20 = arith.addf %11, %19 : vector<4x128xf32>
      %c1_i32_17 = arith.constant 1 : i32
      %21 = arith.addi %arg5, %c1_i32_17 : i32
      %c0_18 = arith.constant 0 : index
      %22 = arith.index_cast %21 : i32 to index
      %c0_19 = arith.constant 0 : index
      %c0_20 = arith.constant 0 : index
      %23 = vector.load %arg1[%c0_18, %22, %c0_19, %c0_20] : memref<1x5x5x256xbf16, #tpu.memory_space<vmem>>, vector<1x1x4x256xbf16>
      %24 = vector.shape_cast %23 : vector<1x1x4x256xbf16> to vector<1x4x256xbf16>
      %25 = vector.shape_cast %24 : vector<1x4x256xbf16> to vector<4x256xbf16>
      %c2 = arith.constant 2 : index
      %c0_21 = arith.constant 0 : index
      %c0_22 = arith.constant 0 : index
      %26 = vector.load %arg2[%c2, %c0_21, %c0_22] : memref<4x256x128xbf16, #tpu.memory_space<vmem>>, vector<1x256x128xbf16>
      %27 = vector.shape_cast %26 : vector<1x256x128xbf16> to vector<256x128xbf16>
      %cst_23 = arith.constant dense<0.000000e+00> : vector<4x128xf32>
      %28 = tpu.matmul %25, %27, %cst_23 {dimension_numbers = #tpu.dot_dimension_numbers<[1], [0], [0], [1], [0, 0, 1, 1], [], []>} : vector<4x256xbf16>, vector<256x128xbf16>, vector<4x128xf32> -> vector<4x128xf32>
      %29 = arith.addf %20, %28 : vector<4x128xf32>
      %c1_i32_24 = arith.constant 1 : i32
      %30 = arith.addi %arg5, %c1_i32_24 : i32
      %c0_25 = arith.constant 0 : index
      %31 = arith.index_cast %30 : i32 to index
      %c1_26 = arith.constant 1 : index
      %c0_27 = arith.constant 0 : index
      %32 = vector.load %arg1[%c0_25, %31, %c1_26, %c0_27] : memref<1x5x5x256xbf16, #tpu.memory_space<vmem>>, vector<1x1x4x256xbf16>
      %33 = vector.shape_cast %32 : vector<1x1x4x256xbf16> to vector<1x4x256xbf16>
      %34 = vector.shape_cast %33 : vector<1x4x256xbf16> to vector<4x256xbf16>
      %c3 = arith.constant 3 : index
      %c0_28 = arith.constant 0 : index
      %c0_29 = arith.constant 0 : index
      %35 = vector.load %arg2[%c3, %c0_28, %c0_29] : memref<4x256x128xbf16, #tpu.memory_space<vmem>>, vector<1x256x128xbf16>
      %36 = vector.shape_cast %35 : vector<1x256x128xbf16> to vector<256x128xbf16>
      %cst_30 = arith.constant dense<0.000000e+00> : vector<4x128xf32>
      %37 = tpu.matmul %34, %36, %cst_30 {dimension_numbers = #tpu.dot_dimension_numbers<[1], [0], [0], [1], [0, 0, 1, 1], [], []>} : vector<4x256xbf16>, vector<256x128xbf16>, vector<4x128xf32> -> vector<4x128xf32>
      %38 = arith.addf %29, %37 : vector<4x128xf32>
      %39 = vector.broadcast %0 : vector<1x128xf32> to vector<4x128xf32>
      %40 = arith.addf %38, %39 : vector<4x128xf32>
      %cst_31 = arith.constant 0.000000e+00 : f32
      %41 = vector.broadcast %cst_31 : f32 to vector<4x128xf32>
      %42 = arith.maximumf %40, %41 : vector<4x128xf32>
      %43 = vector.shape_cast %42 : vector<4x128xf32> to vector<1x4x128xf32>
      %44 = arith.truncf %43 : vector<1x4x128xf32> to vector<1x4x128xbf16>
      %c0_32 = arith.constant 0 : index
      %45 = arith.index_cast %arg5 : i32 to index
      %c0_33 = arith.constant 0 : index
      %c0_34 = arith.constant 0 : index
      %46 = vector.load %arg4[%c0_32, %45, %c0_33, %c0_34] : memref<1x4x4x128xbf16, #tpu.memory_space<vmem>>, vector<1x1x4x128xbf16>
      %47 = vector.shape_cast %46 : vector<1x1x4x128xbf16> to vector<1x4x128xbf16>
      %48 = vector.shape_cast %44 : vector<1x4x128xbf16> to vector<1x1x4x128xbf16>
      tpu.vector_store %arg4[%c0_32, %45, %c0_33, %c0_34], %48 {strides = array<i32>} : memref<1x4x4x128xbf16, #tpu.memory_space<vmem>>, vector<1x1x4x128xbf16>,
    }
    %c4_i32_1 = arith.constant 4 : i32
    return
  }
  func.func @transform_0(%arg0: i32) -> (i32, i32, i32, i32) {
    %c0_i32 = arith.constant 0 : i32
    %c0_i32_0 = arith.constant 0 : i32
    %c0_i32_1 = arith.constant 0 : i32
    %c0_i32_2 = arith.constant 0 : i32
    return %arg0, %c0_i32, %c0_i32_0, %c0_i32_1 : i32, i32, i32, i32
  }
  func.func @transform_1(%arg0: i32) -> (i32, i32, i32) {
    %c0_i32 = arith.constant 0 : i32
    %c0_i32_0 = arith.constant 0 : i32
    %c0_i32_1 = arith.constant 0 : i32
    %c0_i32_2 = arith.constant 0 : i32
    return %c0_i32, %c0_i32_0, %c0_i32_1 : i32, i32, i32
  }
  func.func @transform_2(%arg0: i32) -> (i32, i32) {
    %c0_i32 = arith.constant 0 : i32
    %c0_i32_0 = arith.constant 0 : i32
    %c0_i32_1 = arith.constant 0 : i32
    return %c0_i32, %c0_i32_0 : i32, i32
  }
  func.func @transform_3(%arg0: i32) -> (i32, i32, i32, i32) {
    %c0_i32 = arith.constant 0 : i32
    %c0_i32_0 = arith.constant 0 : i32
    %c0_i32_1 = arith.constant 0 : i32
    %c0_i32_2 = arith.constant 0 : i32
    return %arg0, %c0_i32, %c0_i32_0, %c0_i32_1 : i32, i32, i32, i32
  }
}

module attributes {stable_mosaic.version = 11 : i64} {
  func.func @_conv2x2_kernel(%arg0: i32, %arg1: memref<1x6x6x128xbf16, #tpu.memory_space<vmem>>, %arg2: memref<4x128x256xbf16, #tpu.memory_space<vmem>>, %arg3: memref<1x256xf32, #tpu.memory_space<vmem>>, %arg4: memref<1x5x5x256xbf16, #tpu.memory_space<vmem>>) attributes {dimension_semantics = [#tpu.dimension_semantics<parallel>], iteration_bounds = array<i64: 2>, scalar_prefetch = 0 : i64, scratch_operands = 0 : i64, tpu.core_type = #tpu.core_type<tc>, window_params = [{transform_indices = @transform_0, window_bounds = array<i64: 1, 6, 6, 128>}, {pipeline_mode = #tpu.pipeline_mode<synchronous>, transform_indices = @transform_1, window_bounds = array<i64: 4, 128, 256>}, {pipeline_mode = #tpu.pipeline_mode<synchronous>, transform_indices = @transform_2, window_bounds = array<i64: 1, 256>}, {transform_indices = @transform_3, window_bounds = array<i64: 1, 5, 5, 256>}]} {
    %c0 = arith.constant 0 : index
    %c0_0 = arith.constant 0 : index
    %0 = vector.load %arg3[%c0, %c0_0] : memref<1x256xf32, #tpu.memory_space<vmem>>, vector<1x256xf32>
    %c0_i32 = arith.constant 0 : i32
    %c5_i32 = arith.constant 5 : i32
    %1 = arith.addi %c0_i32, %c5_i32 : i32
    %c1_i32 = arith.constant 1 : i32
    scf.for %arg5 = %c0_i32 to %1 step %c1_i32  : i32 {
      %cst = arith.constant 0.000000e+00 : f32
      %2 = vector.broadcast %cst : f32 to vector<5x256xf32>
      %c0_i32_2 = arith.constant 0 : i32
      %3 = arith.addi %arg5, %c0_i32_2 : i32
      %c0_3 = arith.constant 0 : index
      %4 = arith.index_cast %3 : i32 to index
      %c0_4 = arith.constant 0 : index
      %c0_5 = arith.constant 0 : index
      %5 = vector.load %arg1[%c0_3, %4, %c0_4, %c0_5] : memref<1x6x6x128xbf16, #tpu.memory_space<vmem>>, vector<1x1x5x128xbf16>
      %6 = vector.shape_cast %5 : vector<1x1x5x128xbf16> to vector<1x5x128xbf16>
      %7 = vector.shape_cast %6 : vector<1x5x128xbf16> to vector<5x128xbf16>
      %c0_6 = arith.constant 0 : index
      %c0_7 = arith.constant 0 : index
      %c0_8 = arith.constant 0 : index
      %8 = vector.load %arg2[%c0_6, %c0_7, %c0_8] : memref<4x128x256xbf16, #tpu.memory_space<vmem>>, vector<1x128x256xbf16>
      %9 = vector.shape_cast %8 : vector<1x128x256xbf16> to vector<128x256xbf16>
      %cst_9 = arith.constant dense<0.000000e+00> : vector<5x256xf32>
      %10 = tpu.matmul %7, %9, %cst_9 {dimension_numbers = #tpu.dot_dimension_numbers<[1], [0], [0], [1], [0, 0, 1, 1], [], []>} : vector<5x128xbf16>, vector<128x256xbf16>, vector<5x256xf32> -> vector<5x256xf32>
      %11 = arith.addf %2, %10 : vector<5x256xf32>
      %c0_i32_10 = arith.constant 0 : i32
      %12 = arith.addi %arg5, %c0_i32_10 : i32
      %c0_11 = arith.constant 0 : index
      %13 = arith.index_cast %12 : i32 to index
      %c1 = arith.constant 1 : index
      %c0_12 = arith.constant 0 : index
      %14 = vector.load %arg1[%c0_11, %13, %c1, %c0_12] : memref<1x6x6x128xbf16, #tpu.memory_space<vmem>>, vector<1x1x5x128xbf16>
      %15 = vector.shape_cast %14 : vector<1x1x5x128xbf16> to vector<1x5x128xbf16>
      %16 = vector.shape_cast %15 : vector<1x5x128xbf16> to vector<5x128xbf16>
      %c1_13 = arith.constant 1 : index
      %c0_14 = arith.constant 0 : index
      %c0_15 = arith.constant 0 : index
      %17 = vector.load %arg2[%c1_13, %c0_14, %c0_15] : memref<4x128x256xbf16, #tpu.memory_space<vmem>>, vector<1x128x256xbf16>
      %18 = vector.shape_cast %17 : vector<1x128x256xbf16> to vector<128x256xbf16>
      %cst_16 = arith.constant dense<0.000000e+00> : vector<5x256xf32>
      %19 = tpu.matmul %16, %18, %cst_16 {dimension_numbers = #tpu.dot_dimension_numbers<[1], [0], [0], [1], [0, 0, 1, 1], [], []>} : vector<5x128xbf16>, vector<128x256xbf16>, vector<5x256xf32> -> vector<5x256xf32>
      %20 = arith.addf %11, %19 : vector<5x256xf32>
      %c1_i32_17 = arith.constant 1 : i32
      %21 = arith.addi %arg5, %c1_i32_17 : i32
      %c0_18 = arith.constant 0 : index
      %22 = arith.index_cast %21 : i32 to index
      %c0_19 = arith.constant 0 : index
      %c0_20 = arith.constant 0 : index
      %23 = vector.load %arg1[%c0_18, %22, %c0_19, %c0_20] : memref<1x6x6x128xbf16, #tpu.memory_space<vmem>>, vector<1x1x5x128xbf16>
      %24 = vector.shape_cast %23 : vector<1x1x5x128xbf16> to vector<1x5x128xbf16>
      %25 = vector.shape_cast %24 : vector<1x5x128xbf16> to vector<5x128xbf16>
      %c2 = arith.constant 2 : index
      %c0_21 = arith.constant 0 : index
      %c0_22 = arith.constant 0 : index
      %26 = vector.load %arg2[%c2, %c0_21, %c0_22] : memref<4x128x256xbf16, #tpu.memory_space<vmem>>, vector<1x128x256xbf16>
      %27 = vector.shape_cast %26 : vector<1x128x256xbf16> to vector<128x256xbf16>
      %cst_23 = arith.constant dense<0.000000e+00> : vector<5x256xf32>
      %28 = tpu.matmul %25, %27, %cst_23 {dimension_numbers = #tpu.dot_dimension_numbers<[1], [0], [0], [1], [0, 0, 1, 1], [], []>} : vector<5x128xbf16>, vector<128x256xbf16>, vector<5x256xf32> -> vector<5x256xf32>
      %29 = arith.addf %20, %28 : vector<5x256xf32>
      %c1_i32_24 = arith.constant 1 : i32
      %30 = arith.addi %arg5, %c1_i32_24 : i32
      %c0_25 = arith.constant 0 : index
      %31 = arith.index_cast %30 : i32 to index
      %c1_26 = arith.constant 1 : index
      %c0_27 = arith.constant 0 : index
      %32 = vector.load %arg1[%c0_25, %31, %c1_26, %c0_27] : memref<1x6x6x128xbf16, #tpu.memory_space<vmem>>, vector<1x1x5x128xbf16>
      %33 = vector.shape_cast %32 : vector<1x1x5x128xbf16> to vector<1x5x128xbf16>
      %34 = vector.shape_cast %33 : vector<1x5x128xbf16> to vector<5x128xbf16>
      %c3 = arith.constant 3 : index
      %c0_28 = arith.constant 0 : index
      %c0_29 = arith.constant 0 : index
      %35 = vector.load %arg2[%c3, %c0_28, %c0_29] : memref<4x128x256xbf16, #tpu.memory_space<vmem>>, vector<1x128x256xbf16>
      %36 = vector.shape_cast %35 : vector<1x128x256xbf16> to vector<128x256xbf16>
      %cst_30 = arith.constant dense<0.000000e+00> : vector<5x256xf32>
      %37 = tpu.matmul %34, %36, %cst_30 {dimension_numbers = #tpu.dot_dimension_numbers<[1], [0], [0], [1], [0, 0, 1, 1], [], []>} : vector<5x128xbf16>, vector<128x256xbf16>, vector<5x256xf32> -> vector<5x256xf32>
      %38 = arith.addf %29, %37 : vector<5x256xf32>
      %39 = vector.broadcast %0 : vector<1x256xf32> to vector<5x256xf32>
      %40 = arith.addf %38, %39 : vector<5x256xf32>
      %cst_31 = arith.constant 0.000000e+00 : f32
      %41 = vector.broadcast %cst_31 : f32 to vector<5x256xf32>
      %42 = arith.maximumf %40, %41 : vector<5x256xf32>
      %43 = vector.shape_cast %42 : vector<5x256xf32> to vector<1x5x256xf32>
      %44 = arith.truncf %43 : vector<1x5x256xf32> to vector<1x5x256xbf16>
      %c0_32 = arith.constant 0 : index
      %45 = arith.index_cast %arg5 : i32 to index
      %c0_33 = arith.constant 0 : index
      %c0_34 = arith.constant 0 : index
      %46 = vector.load %arg4[%c0_32, %45, %c0_33, %c0_34] : memref<1x5x5x256xbf16, #tpu.memory_space<vmem>>, vector<1x1x5x256xbf16>
      %47 = vector.shape_cast %46 : vector<1x1x5x256xbf16> to vector<1x5x256xbf16>
      %48 = vector.shape_cast %44 : vector<1x5x256xbf16> to vector<1x1x5x256xbf16>
      tpu.vector_store %arg4[%c0_32, %45, %c0_33, %c0_34], %48 {strides = array<i32>} : memref<1x5x5x256xbf16, #tpu.memory_space<vmem>>, vector<1x1x5x256xbf16>,
    }
    %c5_i32_1 = arith.constant 5 : i32
    return
  }
  func.func @transform_0(%arg0: i32) -> (i32, i32, i32, i32) {
    %c0_i32 = arith.constant 0 : i32
    %c0_i32_0 = arith.constant 0 : i32
    %c0_i32_1 = arith.constant 0 : i32
    %c0_i32_2 = arith.constant 0 : i32
    return %arg0, %c0_i32, %c0_i32_0, %c0_i32_1 : i32, i32, i32, i32
  }
  func.func @transform_1(%arg0: i32) -> (i32, i32, i32) {
    %c0_i32 = arith.constant 0 : i32
    %c0_i32_0 = arith.constant 0 : i32
    %c0_i32_1 = arith.constant 0 : i32
    %c0_i32_2 = arith.constant 0 : i32
    return %c0_i32, %c0_i32_0, %c0_i32_1 : i32, i32, i32
  }
  func.func @transform_2(%arg0: i32) -> (i32, i32) {
    %c0_i32 = arith.constant 0 : i32
    %c0_i32_0 = arith.constant 0 : i32
    %c0_i32_1 = arith.constant 0 : i32
    return %c0_i32, %c0_i32_0 : i32, i32
  }
  func.func @transform_3(%arg0: i32) -> (i32, i32, i32, i32) {
    %c0_i32 = arith.constant 0 : i32
    %c0_i32_0 = arith.constant 0 : i32
    %c0_i32_1 = arith.constant 0 : i32
    %c0_i32_2 = arith.constant 0 : i32
    return %arg0, %c0_i32, %c0_i32_0, %c0_i32_1 : i32, i32, i32, i32
  }
}

module attributes {stable_mosaic.version = 11 : i64} {
  func.func @_conv2x2_kernel(%arg0: i32, %arg1: memref<1x10x10x64xbf16, #tpu.memory_space<vmem>>, %arg2: memref<4x64x12xbf16, #tpu.memory_space<vmem>>, %arg3: memref<1x12xf32, #tpu.memory_space<vmem>>, %arg4: memref<1x9x9x12xf32, #tpu.memory_space<vmem>>) attributes {dimension_semantics = [#tpu.dimension_semantics<parallel>], iteration_bounds = array<i64: 2>, scalar_prefetch = 0 : i64, scratch_operands = 0 : i64, tpu.core_type = #tpu.core_type<tc>, window_params = [{transform_indices = @transform_0, window_bounds = array<i64: 1, 10, 10, 64>}, {pipeline_mode = #tpu.pipeline_mode<synchronous>, transform_indices = @transform_1, window_bounds = array<i64: 4, 64, 12>}, {pipeline_mode = #tpu.pipeline_mode<synchronous>, transform_indices = @transform_2, window_bounds = array<i64: 1, 12>}, {transform_indices = @transform_3, window_bounds = array<i64: 1, 9, 9, 12>}]} {
    %c0 = arith.constant 0 : index
    %c0_0 = arith.constant 0 : index
    %0 = vector.load %arg3[%c0, %c0_0] : memref<1x12xf32, #tpu.memory_space<vmem>>, vector<1x12xf32>
    %c0_i32 = arith.constant 0 : i32
    %c9_i32 = arith.constant 9 : i32
    %1 = arith.addi %c0_i32, %c9_i32 : i32
    %c1_i32 = arith.constant 1 : i32
    scf.for %arg5 = %c0_i32 to %1 step %c1_i32  : i32 {
      %cst = arith.constant 0.000000e+00 : f32
      %2 = vector.broadcast %cst : f32 to vector<9x12xf32>
      %c0_i32_2 = arith.constant 0 : i32
      %3 = arith.addi %arg5, %c0_i32_2 : i32
      %c0_3 = arith.constant 0 : index
      %4 = arith.index_cast %3 : i32 to index
      %c0_4 = arith.constant 0 : index
      %c0_5 = arith.constant 0 : index
      %5 = vector.load %arg1[%c0_3, %4, %c0_4, %c0_5] : memref<1x10x10x64xbf16, #tpu.memory_space<vmem>>, vector<1x1x9x64xbf16>
      %6 = vector.shape_cast %5 : vector<1x1x9x64xbf16> to vector<1x9x64xbf16>
      %7 = vector.shape_cast %6 : vector<1x9x64xbf16> to vector<9x64xbf16>
      %c0_6 = arith.constant 0 : index
      %c0_7 = arith.constant 0 : index
      %c0_8 = arith.constant 0 : index
      %8 = vector.load %arg2[%c0_6, %c0_7, %c0_8] : memref<4x64x12xbf16, #tpu.memory_space<vmem>>, vector<1x64x12xbf16>
      %9 = vector.shape_cast %8 : vector<1x64x12xbf16> to vector<64x12xbf16>
      %cst_9 = arith.constant dense<0.000000e+00> : vector<9x12xf32>
      %10 = tpu.matmul %7, %9, %cst_9 {dimension_numbers = #tpu.dot_dimension_numbers<[1], [0], [0], [1], [0, 0, 1, 1], [], []>} : vector<9x64xbf16>, vector<64x12xbf16>, vector<9x12xf32> -> vector<9x12xf32>
      %11 = arith.addf %2, %10 : vector<9x12xf32>
      %c0_i32_10 = arith.constant 0 : i32
      %12 = arith.addi %arg5, %c0_i32_10 : i32
      %c0_11 = arith.constant 0 : index
      %13 = arith.index_cast %12 : i32 to index
      %c1 = arith.constant 1 : index
      %c0_12 = arith.constant 0 : index
      %14 = vector.load %arg1[%c0_11, %13, %c1, %c0_12] : memref<1x10x10x64xbf16, #tpu.memory_space<vmem>>, vector<1x1x9x64xbf16>
      %15 = vector.shape_cast %14 : vector<1x1x9x64xbf16> to vector<1x9x64xbf16>
      %16 = vector.shape_cast %15 : vector<1x9x64xbf16> to vector<9x64xbf16>
      %c1_13 = arith.constant 1 : index
      %c0_14 = arith.constant 0 : index
      %c0_15 = arith.constant 0 : index
      %17 = vector.load %arg2[%c1_13, %c0_14, %c0_15] : memref<4x64x12xbf16, #tpu.memory_space<vmem>>, vector<1x64x12xbf16>
      %18 = vector.shape_cast %17 : vector<1x64x12xbf16> to vector<64x12xbf16>
      %cst_16 = arith.constant dense<0.000000e+00> : vector<9x12xf32>
      %19 = tpu.matmul %16, %18, %cst_16 {dimension_numbers = #tpu.dot_dimension_numbers<[1], [0], [0], [1], [0, 0, 1, 1], [], []>} : vector<9x64xbf16>, vector<64x12xbf16>, vector<9x12xf32> -> vector<9x12xf32>
      %20 = arith.addf %11, %19 : vector<9x12xf32>
      %c1_i32_17 = arith.constant 1 : i32
      %21 = arith.addi %arg5, %c1_i32_17 : i32
      %c0_18 = arith.constant 0 : index
      %22 = arith.index_cast %21 : i32 to index
      %c0_19 = arith.constant 0 : index
      %c0_20 = arith.constant 0 : index
      %23 = vector.load %arg1[%c0_18, %22, %c0_19, %c0_20] : memref<1x10x10x64xbf16, #tpu.memory_space<vmem>>, vector<1x1x9x64xbf16>
      %24 = vector.shape_cast %23 : vector<1x1x9x64xbf16> to vector<1x9x64xbf16>
      %25 = vector.shape_cast %24 : vector<1x9x64xbf16> to vector<9x64xbf16>
      %c2 = arith.constant 2 : index
      %c0_21 = arith.constant 0 : index
      %c0_22 = arith.constant 0 : index
      %26 = vector.load %arg2[%c2, %c0_21, %c0_22] : memref<4x64x12xbf16, #tpu.memory_space<vmem>>, vector<1x64x12xbf16>
      %27 = vector.shape_cast %26 : vector<1x64x12xbf16> to vector<64x12xbf16>
      %cst_23 = arith.constant dense<0.000000e+00> : vector<9x12xf32>
      %28 = tpu.matmul %25, %27, %cst_23 {dimension_numbers = #tpu.dot_dimension_numbers<[1], [0], [0], [1], [0, 0, 1, 1], [], []>} : vector<9x64xbf16>, vector<64x12xbf16>, vector<9x12xf32> -> vector<9x12xf32>
      %29 = arith.addf %20, %28 : vector<9x12xf32>
      %c1_i32_24 = arith.constant 1 : i32
      %30 = arith.addi %arg5, %c1_i32_24 : i32
      %c0_25 = arith.constant 0 : index
      %31 = arith.index_cast %30 : i32 to index
      %c1_26 = arith.constant 1 : index
      %c0_27 = arith.constant 0 : index
      %32 = vector.load %arg1[%c0_25, %31, %c1_26, %c0_27] : memref<1x10x10x64xbf16, #tpu.memory_space<vmem>>, vector<1x1x9x64xbf16>
      %33 = vector.shape_cast %32 : vector<1x1x9x64xbf16> to vector<1x9x64xbf16>
      %34 = vector.shape_cast %33 : vector<1x9x64xbf16> to vector<9x64xbf16>
      %c3 = arith.constant 3 : index
      %c0_28 = arith.constant 0 : index
      %c0_29 = arith.constant 0 : index
      %35 = vector.load %arg2[%c3, %c0_28, %c0_29] : memref<4x64x12xbf16, #tpu.memory_space<vmem>>, vector<1x64x12xbf16>
      %36 = vector.shape_cast %35 : vector<1x64x12xbf16> to vector<64x12xbf16>
      %cst_30 = arith.constant dense<0.000000e+00> : vector<9x12xf32>
      %37 = tpu.matmul %34, %36, %cst_30 {dimension_numbers = #tpu.dot_dimension_numbers<[1], [0], [0], [1], [0, 0, 1, 1], [], []>} : vector<9x64xbf16>, vector<64x12xbf16>, vector<9x12xf32> -> vector<9x12xf32>
      %38 = arith.addf %29, %37 : vector<9x12xf32>
      %39 = vector.broadcast %0 : vector<1x12xf32> to vector<9x12xf32>
      %40 = arith.addf %38, %39 : vector<9x12xf32>
      %41 = math.tanh %40 : vector<9x12xf32>
      %42 = vector.shape_cast %41 : vector<9x12xf32> to vector<1x9x12xf32>
      %c0_31 = arith.constant 0 : index
      %43 = arith.index_cast %arg5 : i32 to index
      %c0_32 = arith.constant 0 : index
      %c0_33 = arith.constant 0 : index
      %44 = vector.load %arg4[%c0_31, %43, %c0_32, %c0_33] : memref<1x9x9x12xf32, #tpu.memory_space<vmem>>, vector<1x1x9x12xf32>
      %45 = vector.shape_cast %44 : vector<1x1x9x12xf32> to vector<1x9x12xf32>
      %46 = vector.shape_cast %42 : vector<1x9x12xf32> to vector<1x1x9x12xf32>
      tpu.vector_store %arg4[%c0_31, %43, %c0_32, %c0_33], %46 {strides = array<i32>} : memref<1x9x9x12xf32, #tpu.memory_space<vmem>>, vector<1x1x9x12xf32>,
    }
    %c9_i32_1 = arith.constant 9 : i32
    return
  }
  func.func @transform_0(%arg0: i32) -> (i32, i32, i32, i32) {
    %c0_i32 = arith.constant 0 : i32
    %c0_i32_0 = arith.constant 0 : i32
    %c0_i32_1 = arith.constant 0 : i32
    %c0_i32_2 = arith.constant 0 : i32
    return %arg0, %c0_i32, %c0_i32_0, %c0_i32_1 : i32, i32, i32, i32
  }
  func.func @transform_1(%arg0: i32) -> (i32, i32, i32) {
    %c0_i32 = arith.constant 0 : i32
    %c0_i32_0 = arith.constant 0 : i32
    %c0_i32_1 = arith.constant 0 : i32
    %c0_i32_2 = arith.constant 0 : i32
    return %c0_i32, %c0_i32_0, %c0_i32_1 : i32, i32, i32
  }
  func.func @transform_2(%arg0: i32) -> (i32, i32) {
    %c0_i32 = arith.constant 0 : i32
    %c0_i32_0 = arith.constant 0 : i32
    %c0_i32_1 = arith.constant 0 : i32
    return %c0_i32, %c0_i32_0 : i32, i32
  }
  func.func @transform_3(%arg0: i32) -> (i32, i32, i32, i32) {
    %c0_i32 = arith.constant 0 : i32
    %c0_i32_0 = arith.constant 0 : i32
    %c0_i32_1 = arith.constant 0 : i32
    %c0_i32_2 = arith.constant 0 : i32
    return %arg0, %c0_i32, %c0_i32_0, %c0_i32_1 : i32, i32, i32, i32
  }
}

</mosaic_0001>

<llo_original>
// kernel: generator_forward.4
$region0: #{generator_forward.4}
  #allocation0 [shape = 'u32[]', space=smem, size = 0x4, offset = 0x4, fixed_abs, tag = 'smem constant byte address 0x4 - core index']
  #allocation1 [shape = 'u32[72,128]{1,0:T(1,128)}', space=vmem, size = 0x9000, scoped, tag = 'internal scratch']
  %s0 = inlined_call_operand.vmem [shape: bf16[2,9,9,12], index: 0, kind: input, shape index: {}]
  %s1 = inlined_call_operand.vmem [shape: bf16[4,12,64], index: 1, kind: input, shape index: {}]
  %s2 = inlined_call_operand.vmem [shape: f32[1,64], index: 2, kind: input, shape index: {}]
  %s3 = inlined_call_operand.vmem [shape: bf16[2,8,8,64], index: 3, kind: output, shape index: {}]
  %s4 = sld [smem:[#allocation0]]
  $region52: #{generator_forward.4} parent=0
    _
  %s6 = ssub.s32 1, %s4
  %s7 = scalar_select 0, %s6, %s4
  loop: start=0, step=1, limit=4
  $region2: #{generator_forward.4} parent=0 // loop_pre_header
    _
  $region3: #{generator_forward.4} parent=0 // loop_header
    %s9 = sphi 0, %s13
    %p10 = scmp.ge.s32.totalorder %s9, 4
    %s19 = sphi 0, %s21
    %s22 = sphi 0, %s19
    %s23 = sphi 0, %s22
    %s39 = sphi 0, %s23
    %s43 = sphi 0, %s43
    %s45 = sphi 0, %s43
    %s46 = sphi 0, %s45
    %s60 = sphi 0, %s46
    %s64 = sphi 0, %s64
    %s66 = sphi 0, %s64
    %s67 = sphi 0, %s66
    %s81 = sphi 0, %s67
    %s87 = sphi 0, %s89
    %s90 = sphi 0, %s87
    %s91 = sphi 0, %s90
    %s107 = sphi 0, %s91
  $region4: #{generator_forward.4} parent=0 // loop_header_branch
    %12 = sbr.rel (%p10) target = $region8
  $region5: #{generator_forward.4} parent=0 // loop_body
    %s14 = ssub.s32 %s9, 1
    %s15 = ssub.s32 %s9, 2
    %s16 = sadd.s32 %s9, 1
    %s17 = ssub.s32 %s9, %s16
    %p18 = scmp.eq.s32.totalorder %s17, 0
    %s20 = sadd.s32 %s19, 1
    %s21 = scalar_select %p18, %s19, %s20
    %p24 = pneg %p18
    %p25 = scmp.eq.s32.totalorder %s9, 1
    %p26 = por %p24, %p25
    %p27 = scmp.ne.s32.totalorder %s19, %s22
    %p28 = scmp.eq.s32.totalorder %s9, 0
    %p29 = por %p27, %p28
    %p30 = scmp.ne.s32.totalorder %s19, %s22
    %p31 = scmp.eq.s32.totalorder %s14, 1
    %p32 = por %p30, %p31
    %p33 = scmp.ne.s32.totalorder %s22, %s23
    %p34 = scmp.eq.s32.totalorder %s14, 0
    %p35 = por %p33, %p34
    %p36 = scmp.ne.s32.totalorder %s22, %s23
    %p37 = scmp.eq.s32.totalorder %s15, 1
    %p38 = por %p36, %p37
    %p40 = scmp.ne.s32.totalorder %s23, %s39
    %p41 = scmp.eq.s32.totalorder %s15, 0
    %p42 = por %p40, %p41
    %s44 = sadd.s32 %s43, 1
    %p47 = scmp.eq.s32.totalorder %s9, 1
    %p48 = scmp.ne.s32.totalorder %s43, %s45
    %p49 = scmp.eq.s32.totalorder %s9, 0
    %p50 = por %p48, %p49
    %p51 = scmp.ne.s32.totalorder %s43, %s45
    %p52 = scmp.eq.s32.totalorder %s14, 1
    %p53 = por %p51, %p52
    %p54 = scmp.ne.s32.totalorder %s45, %s46
    %p55 = scmp.eq.s32.totalorder %s14, 0
    %p56 = por %p54, %p55
    %p57 = scmp.ne.s32.totalorder %s45, %s46
    %p58 = scmp.eq.s32.totalorder %s15, 1
    %p59 = por %p57, %p58
    %p61 = scmp.ne.s32.totalorder %s46, %s60
    %p62 = scmp.eq.s32.totalorder %s15, 0
    %p63 = por %p61, %p62
    %s65 = sadd.s32 %s64, 1
    %p68 = scmp.eq.s32.totalorder %s9, 1
    %p69 = scmp.ne.s32.totalorder %s64, %s66
    %p70 = scmp.eq.s32.totalorder %s9, 0
    %p71 = por %p69, %p70
    %p72 = scmp.ne.s32.totalorder %s64, %s66
    %p73 = scmp.eq.s32.totalorder %s14, 1
    %p74 = por %p72, %p73
    %p75 = scmp.ne.s32.totalorder %s66, %s67
    %p76 = scmp.eq.s32.totalorder %s14, 0
    %p77 = por %p75, %p76
    %p78 = scmp.ne.s32.totalorder %s66, %s67
    %p79 = scmp.eq.s32.totalorder %s15, 1
    %p80 = por %p78, %p79
    %p82 = scmp.ne.s32.totalorder %s67, %s81
    %p83 = scmp.eq.s32.totalorder %s15, 0
    %p84 = por %p82, %p83
    %s85 = ssub.s32 %s9, %s16
    %p86 = scmp.eq.s32.totalorder %s85, 0
    %s88 = sadd.s32 %s87, 1
    %s89 = scalar_select %p86, %s87, %s88
    %p92 = pneg %p86
    %p93 = scmp.eq.s32.totalorder %s9, 1
    %p94 = por %p92, %p93
    %p95 = scmp.ne.s32.totalorder %s87, %s90
    %p96 = scmp.eq.s32.totalorder %s9, 0
    %p97 = por %p95, %p96
    %p98 = scmp.ne.s32.totalorder %s87, %s90
    %p99 = scmp.eq.s32.totalorder %s14, 1
    %p100 = por %p98, %p99
    %p101 = scmp.ne.s32.totalorder %s90, %s91
    %p102 = scmp.eq.s32.totalorder %s14, 0
    %p103 = por %p101, %p102
    %p104 = scmp.ne.s32.totalorder %s90, %s91
    %p105 = scmp.eq.s32.totalorder %s15, 1
    %p106 = por %p104, %p105
    %p108 = scmp.ne.s32.totalorder %s91, %s107
    %p109 = scmp.eq.s32.totalorder %s15, 0
    %p110 = por %p108, %p109
    %p111 = scmp.le.s32.totalorder 1, %s9
    %p112 = scmp.lt.s32.totalorder %s9, 3
    %p113 = pnand %p111, %p112
    %p114 = pneg %p113
    // Predicated region
    $region9: #{generator_forward.4} parent=5 // pred_check
      _
    $region10: #{generator_forward.4} parent=5 // pred_check_branch
      %116 = sbr.rel (%p113) target = $region12
    $region11: #{generator_forward.4} parent=5 // pred_region
      %s117 = ssub.s32 %s9, 1
      // Predicated region
      $region13: #{generator_forward.4} parent=11 // pred_check
        %p118 = pneg %p56
      $region14: #{generator_forward.4} parent=11 // pred_check_branch
        %120 = sbr.rel (%p118) target = $region16
      $region15: #{generator_forward.4} parent=11 // pred_region
        _
      $region16: #{generator_forward.4} parent=11 // pred_fallthru
        _
      // Predicated region
      $region17: #{generator_forward.4} parent=11 // pred_check
        %p121 = pneg %p77
      $region18: #{generator_forward.4} parent=11 // pred_check_branch
        %123 = sbr.rel (%p121) target = $region20
      $region19: #{generator_forward.4} parent=11 // pred_region
        _
      $region20: #{generator_forward.4} parent=11 // pred_fallthru
        _
    $region12: #{generator_forward.4} parent=5 // pred_fallthru
      _
    %p124 = scmp.lt.s32.totalorder %s9, 2
    // Predicated region
    $region21: #{generator_forward.4} parent=5 // pred_check
      %p125 = pneg %p124
    $region22: #{generator_forward.4} parent=5 // pred_check_branch
      %127 = sbr.rel (%p125) target = $region24
    $region23: #{generator_forward.4} parent=5 // pred_region
      // Predicated region
      $region25: #{generator_forward.4} parent=23 // pred_check
        %p128 = pneg %p29
      $region26: #{generator_forward.4} parent=23 // pred_check_branch
        %130 = sbr.rel (%p128) target = $region28
      $region27: #{generator_forward.4} parent=23 // pred_region
        %p131 = scmp.lt.s32.totalorder %s9, 1
        %s132 = scalar_select %p131, %s9, 1
        %s133 = smul.addr %s132, 18
        %s134 = smul.addr %s133, 4
        %s135 = scalar_lea.vmem %s0, %s134
      $region28: #{generator_forward.4} parent=23 // pred_fallthru
        _
    $region24: #{generator_forward.4} parent=5 // pred_fallthru
      _
    %p136 = scmp.le.s32.totalorder 1, %s9
    %p137 = scmp.lt.s32.totalorder %s9, 3
    %p138 = pnand %p136, %p137
    %p139 = pneg %p138
    // Predicated region
    $region29: #{generator_forward.4} parent=5 // pred_check
      _
    $region30: #{generator_forward.4} parent=5 // pred_check_branch
      %141 = sbr.rel (%p138) target = $region32
    $region31: #{generator_forward.4} parent=5 // pred_region
      %s142 = ssub.s32 %s9, 1
      %p143 = scmp.lt.s32.totalorder %s14, 1
      %s144 = scalar_select %p143, %s14, 1
      %s145 = smul.addr %s144, 18
      %s146 = smul.addr %s145, 4
      %s147 = scalar_lea.vmem %s0, %s146
      %p148 = pneg %p35
      %p149 = pneg %p32
      %p150 = pneg %p56
      %p151 = pneg %p53
      %p152 = pneg %p77
      %p153 = pneg %p74
      %p154 = pneg %p103
      %p155 = pneg %p100
      %p156 = scmp.lt.s32.totalorder %s14, 1
      %s157 = scalar_select %p156, %s14, 1
      %s158 = smul.addr %s157, 8
      %s159 = smul.addr %s158, 4
      %s160 = scalar_lea.vmem %s3, %s159
      %p161 = scmp.lt.s32.totalorder %s14, 1
      %s162 = scalar_select %p161, %s14, 1
      %s163 = smul.addr %s162, 18
      %s164 = smul.addr %s163, 4
      %s165 = scalar_lea.vmem %s0, %s164
      %p166 = scmp.lt.s32.totalorder %s14, 1
      %s167 = scalar_select %p166, %s14, 1
      %s168 = smul.addr %s167, 8
      %s169 = smul.addr %s168, 4
      %s170 = scalar_lea.vmem %s3, %s169
      %v172 = vld [vmem:[%s2] sm:$0x1]
      loop: start=0, step=1, limit=8
      $region33: #{generator_forward.4} parent=31 // loop_pre_header
        _
      $region34: #{generator_forward.4} parent=31 // loop_header
        %s174 = sphi 0, %s178
        %p175 = scmp.ge.s32.totalorder %s174, 8
      $region35: #{generator_forward.4} parent=31 // loop_header_branch
        %177 = sbr.rel (%p175) target = $region39
      $region36: #{generator_forward.4} parent=31 // loop_body
        %s179 = smul.u32 %s174, 2
        %s180 = smul.addr %s179, 4
        %s181 = scalar_lea.vmem %s165, %s180
        %v182 = vld [vmem:[%s181] sm:$0xf]
        %v183 = vld [vmem:[%s1] sm:$0xf]
        %v184 = vld [vmem:[%s1 + $0x4] sm:$0x3]
        %v185 = vld [vmem:[%s181 + $0x4] sm:$0x1]
        %s186 = scalar_lea.vmem %s1, 8
        %v187 = vld [vmem:[%s186] sm:$0xf]
        %v188 = vld [vmem:[%s186 + $0x4] sm:$0x3]
        %v191 = vunpack.c.l.b16 %v182
        %v192 = vunpack.c.l.b16 %v185
        %v193 = vpack.c.b16 %v192, %v191
        %v195 = vshrl.u32 %v193, 16
        %v197 = vshll.u32 %v193, 16
        %v199 = vrot.slane %v197, 1
        %v200 = vor.u32 %v195, %v199
        %v203 = vunpack.c.l.b16 %v187
        %v204 = vunpack.c.l.b16 %v188
        %v205 = vpack.c.b16 %v204, %v203
        %vm206 = vcmask 97280
        %v208 = vsel %vm206, %v200, 0
        %vm210 = vcmask 1045504
        %v212 = vsel %vm210, %v205, 0
        %214 = vmatpush.bf16.msra.mxu0 0
        %215 = vmatpush.bf16.msra.mxu0 0
        %216 = vmatpush.bf16.msra.mxu0 0
        %217 = vmatpush.bf16.msra.mxu0 0
        %218 = vmatpush.bf16.msra.mxu0 0
        %219 = vmatpush.bf16.msra.mxu0 0
        %220 = vmatpush.bf16.msra.mxu0 0
        %221 = vmatpush.bf16.msra.mxu0 %v212
        %222 = vmatmul.bf16.gmra.mxu0 %v208
        %v223 = vpop.f32.mrf.mxu0
        %v224 = vadd.f32 0.0, %v223
        %v225 = vpop.f32.mrf.mxu0
        %226 = vdwg.mxu0
        %v229 = vunpack.c.l.b16 %v183
        %v230 = vunpack.c.l.b16 %v184
        %v231 = vpack.c.b16 %v230, %v229
        %v233 = vsel %vm206, %v182, 0
        %v236 = vsel %vm210, %v231, 0
        %238 = vmatpush.bf16.msra.mxu0 0
        %239 = vmatpush.bf16.msra.mxu0 0
        %240 = vmatpush.bf16.msra.mxu0 0
        %241 = vmatpush.bf16.msra.mxu0 0
        %242 = vmatpush.bf16.msra.mxu0 0
        %243 = vmatpush.bf16.msra.mxu0 0
        %244 = vmatpush.bf16.msra.mxu0 0
        %245 = vmatpush.bf16.msra.mxu0 %v236
        %246 = vmatmul.bf16.gmra.mxu0 %v233
        %v247 = vpop.f32.mrf.mxu0
        %v248 = vadd.f32 %v224, %v247
        %v249 = vpop.f32.mrf.mxu0
        %250 = vdwg.mxu0
        %s251 = sadd.s32 %s174, 1
        %s252 = smul.u32 %s251, 2
        %s253 = smul.addr %s252, 4
        %s254 = scalar_lea.vmem %s165, %s253
        %v255 = vld [vmem:[%s254] sm:$0xf]
        %s256 = scalar_lea.vmem %s1, 16
        %v257 = vld [vmem:[%s256] sm:$0xf]
        %v258 = vld [vmem:[%s256 + $0x4] sm:$0x3]
        %v261 = vunpack.c.l.b16 %v257
        %v262 = vunpack.c.l.b16 %v258
        %v263 = vpack.c.b16 %v262, %v261
        %v265 = vsel %vm206, %v255, 0
        %v268 = vsel %vm210, %v263, 0
        %270 = vmatpush.bf16.msra.mxu0 0
        %271 = vmatpush.bf16.msra.mxu0 0
        %272 = vmatpush.bf16.msra.mxu0 0
        %273 = vmatpush.bf16.msra.mxu0 0
        %274 = vmatpush.bf16.msra.mxu0 0
        %275 = vmatpush.bf16.msra.mxu0 0
        %276 = vmatpush.bf16.msra.mxu0 0
        %277 = vmatpush.bf16.msra.mxu0 %v268
        %278 = vmatmul.bf16.gmra.mxu0 %v265
        %v279 = vpop.f32.mrf.mxu0
        %v280 = vadd.f32 0.0, %v279
        %v281 = vpop.f32.mrf.mxu0
        %282 = vdwg.mxu0
        %v283 = vadd.f32 %v248, %v280
        %v284 = vld [vmem:[%s254] sm:$0xf]
        %v285 = vld [vmem:[%s254 + $0x4] sm:$0x1]
        %s286 = scalar_lea.vmem %s1, 24
        %v287 = vld [vmem:[%s286] sm:$0xf]
        %v288 = vld [vmem:[%s286 + $0x4] sm:$0x3]
        %v291 = vunpack.c.l.b16 %v284
        %v292 = vunpack.c.l.b16 %v285
        %v293 = vpack.c.b16 %v292, %v291
        %v295 = vshrl.u32 %v293, 16
        %v297 = vshll.u32 %v293, 16
        %v299 = vrot.slane %v297, 1
        %v300 = vor.u32 %v295, %v299
        %v303 = vunpack.c.l.b16 %v287
        %v304 = vunpack.c.l.b16 %v288
        %v305 = vpack.c.b16 %v304, %v303
        %v307 = vsel %vm206, %v300, 0
        %v310 = vsel %vm210, %v305, 0
        %312 = vmatpush.bf16.msra.mxu0 0
        %313 = vmatpush.bf16.msra.mxu0 0
        %314 = vmatpush.bf16.msra.mxu0 0
        %315 = vmatpush.bf16.msra.mxu0 0
        %316 = vmatpush.bf16.msra.mxu0 0
        %317 = vmatpush.bf16.msra.mxu0 0
        %318 = vmatpush.bf16.msra.mxu0 0
        %319 = vmatpush.bf16.msra.mxu0 %v310
        %320 = vmatmul.bf16.gmra.mxu0 %v307
        %v321 = vpop.f32.mrf.mxu0
        %v322 = vadd.f32 0.0, %v321
        %v323 = vpop.f32.mrf.mxu0
        %324 = vdwg.mxu0
        %v325 = vadd.f32 %v283, %v322
        %v327 = vperm.slane %v172, 0
        %v329 = vadd.f32 %v325, %v327
        %v330 = vmax.f32 %v329, 0.0
        %v331 = vpack.c.bf16 %v330, %v330
        %s332 = smul.addr %s174, 4
        %s333 = scalar_lea.vmem %s170, %s332
        %vm334 = vcmask 519168
        %335 = vst.msk [vmem:[%s333] sm:$0xf] %vm334, %v331
      $region37: #{generator_forward.4} parent=31 // loop_footer
        %s178 = sadd.s32 1, %s174
      $region38: #{generator_forward.4} parent=31 // loop_footer_branch
        %173 = sbr.rel target = $region34
      $region39: #{generator_forward.4} parent=31 // loop_exit
        _
      %p336 = scmp.lt.s32.totalorder %s14, 1
      %s337 = scalar_select %p336, %s14, 1
      %s338 = smul.addr %s337, 8
      %s339 = smul.addr %s338, 4
      %s340 = scalar_lea.vmem %s3, %s339
      // Predicated region
      $region40: #{generator_forward.4} parent=31 // pred_check
        %p341 = pneg %p100
      $region41: #{generator_forward.4} parent=31 // pred_check_branch
        %343 = sbr.rel (%p341) target = $region43
      $region42: #{generator_forward.4} parent=31 // pred_region
        _
      $region43: #{generator_forward.4} parent=31 // pred_fallthru
        _
    $region32: #{generator_forward.4} parent=5 // pred_fallthru
      _
    %p344 = scmp.le.s32.totalorder 2, %s9
    // Predicated region
    $region44: #{generator_forward.4} parent=5 // pred_check
      %p345 = pneg %p344
    $region45: #{generator_forward.4} parent=5 // pred_check_branch
      %347 = sbr.rel (%p345) target = $region47
    $region46: #{generator_forward.4} parent=5 // pred_region
      %s348 = ssub.s32 %s9, 2
      // Predicated region
      $region48: #{generator_forward.4} parent=46 // pred_check
        %p349 = pneg %p106
      $region49: #{generator_forward.4} parent=46 // pred_check_branch
        %351 = sbr.rel (%p349) target = $region51
      $region50: #{generator_forward.4} parent=46 // pred_region
        %p352 = scmp.lt.s32.totalorder %s15, 1
        %s353 = scalar_select %p352, %s15, 1
        %s354 = smul.addr %s353, 8
        %s355 = smul.addr %s354, 4
        %s356 = scalar_lea.vmem %s3, %s355
      $region51: #{generator_forward.4} parent=46 // pred_fallthru
        _
    $region47: #{generator_forward.4} parent=5 // pred_fallthru
      _
  $region6: #{generator_forward.4} parent=0 // loop_footer
    %s13 = sadd.s32 1, %s9
  $region7: #{generator_forward.4} parent=0 // loop_footer_branch
    %8 = sbr.rel target = $region3
  $region8: #{generator_forward.4} parent=0 // loop_exit
    _

// kernel: tile.13
$region0: #{tile.13}
  #allocation0 [shape = 's32[1]{0}', space=sflag, size = 0x4, scoped, tag = 'scoped memory for tile.13']
  %s0 = inlined_call_operand.vmem [shape: f32[64], index: 0, kind: input, shape index: {}]
  %s1 = inlined_call_operand.vmem [shape: f32[4,64], index: 1, kind: output, shape index: {}]
  // Predicated region
  $region2: #{tile.13} parent=0 // pred_check
    _
  $region3: #{tile.13} parent=0 // pred_check_branch
    %3 = sbr.rel (0) target = $region5
  $region4: #{tile.13} parent=0 // pred_region
    _
  $region5: #{tile.13} parent=0 // pred_fallthru
    _
  %v4 = vld [vmem:[%s0] ss:$0 sm:$0xff]
  %5 = vst [vmem:[%s1] sm:$0xf] %v4

// kernel: tile.14
$region0: #{tile.14}
  %s0 = inlined_call_operand.vmem [shape: f32[4,64], index: 0, kind: input, shape index: {}]
  %s1 = inlined_call_operand.vmem [shape: f32[1,256], index: 1, kind: output, shape index: {}]
  $region1: #{tile.14} parent=0
    #allocation0 [shape = 'u8[8192]{0}', space=vmem, size = 0x2000, scoped, tag = 'scoped mem for output reshape']
    #allocation1 [shape = 'u8[4096]{0}', space=vmem, size = 0x1000, scoped, tag = 'scoped mem for input reshape']
    %s3 = ssub.s32 16, 1
    %v4 = vld [vmem:[%s0] sm:%s3]
    %5 = vst [vmem:[#allocation1] sm:%s3] %v4
    %s6 = smov 3
    %v7 = vld [vmem:[#allocation1] ss:$2 sm:%s6]
    %vm8 = vcmask 523264
    %9 = vst.msk [vmem:[#allocation0] ss:$8 sm:$0x3] %vm8, %v7
    %s10 = scalar_lea.vmem [#allocation1], 1
    %s11 = smov 3
    %v12 = vld [vmem:[%s10] ss:$2 sm:%s11]
    %13 = vrot.lane.b32.xlu0 %v12, 64
    %v14 = vpop.permute.xlu0 %13
    %vm15 = vcmask 1048064
    %16 = vst.msk [vmem:[#allocation0] ss:$8 sm:$0x3] %vm15, %v14
    %s18 = ssub.s32 2, 1
    %v19 = vld [vmem:[#allocation0] sm:%s18]
    %s21 = ssub.s32 2, 1
    %22 = vst [vmem:[%s1] sm:%s21] %v19
    %s23 = scalar_lea.vmem [#allocation0], 8
    %v24 = vld [vmem:[%s23] sm:%s18]
    %s26 = ssub.s32 2, 1
    %s27 = scalar_lea.vmem %s1, 1
    %28 = vst [vmem:[%s27] sm:%s26] %v24

// kernel: generator_forward.5
$region0: #{generator_forward.5}
  #allocation0 [shape = 'u32[]', space=smem, size = 0x4, offset = 0x4, fixed_abs, tag = 'smem constant byte address 0x4 - core index']
  #allocation1 [shape = 'u32[72,128]{1,0:T(1,128)}', space=vmem, size = 0x9000, scoped, tag = 'internal scratch']
  %s0 = inlined_call_operand.vmem [shape: bf16[2,5,5,256], index: 0, kind: input, shape index: {}]
  %s1 = inlined_call_operand.vmem [shape: bf16[4,256,128], index: 1, kind: input, shape index: {}]
  %s2 = inlined_call_operand.vmem [shape: f32[1,128], index: 2, kind: input, shape index: {}]
  %s3 = inlined_call_operand.vmem [shape: bf16[2,4,4,128], index: 3, kind: output, shape index: {}]
  %s4 = sld [smem:[#allocation0]]
  $region52: #{generator_forward.5} parent=0
    _
  %s6 = ssub.s32 1, %s4
  %s7 = scalar_select 0, %s6, %s4
  loop: start=0, step=1, limit=4
  $region2: #{generator_forward.5} parent=0 // loop_pre_header
    _
  $region3: #{generator_forward.5} parent=0 // loop_header
    %s9 = sphi 0, %s13
    %p10 = scmp.ge.s32.totalorder %s9, 4
    %s19 = sphi 0, %s21
    %s22 = sphi 0, %s19
    %s23 = sphi 0, %s22
    %s39 = sphi 0, %s23
    %s43 = sphi 0, %s43
    %s45 = sphi 0, %s43
    %s46 = sphi 0, %s45
    %s60 = sphi 0, %s46
    %s64 = sphi 0, %s64
    %s66 = sphi 0, %s64
    %s67 = sphi 0, %s66
    %s81 = sphi 0, %s67
    %s87 = sphi 0, %s89
    %s90 = sphi 0, %s87
    %s91 = sphi 0, %s90
    %s107 = sphi 0, %s91
  $region4: #{generator_forward.5} parent=0 // loop_header_branch
    %12 = sbr.rel (%p10) target = $region8
  $region5: #{generator_forward.5} parent=0 // loop_body
    %s14 = ssub.s32 %s9, 1
    %s15 = ssub.s32 %s9, 2
    %s16 = sadd.s32 %s9, 1
    %s17 = ssub.s32 %s9, %s16
    %p18 = scmp.eq.s32.totalorder %s17, 0
    %s20 = sadd.s32 %s19, 1
    %s21 = scalar_select %p18, %s19, %s20
    %p24 = pneg %p18
    %p25 = scmp.eq.s32.totalorder %s9, 1
    %p26 = por %p24, %p25
    %p27 = scmp.ne.s32.totalorder %s19, %s22
    %p28 = scmp.eq.s32.totalorder %s9, 0
    %p29 = por %p27, %p28
    %p30 = scmp.ne.s32.totalorder %s19, %s22
    %p31 = scmp.eq.s32.totalorder %s14, 1
    %p32 = por %p30, %p31
    %p33 = scmp.ne.s32.totalorder %s22, %s23
    %p34 = scmp.eq.s32.totalorder %s14, 0
    %p35 = por %p33, %p34
    %p36 = scmp.ne.s32.totalorder %s22, %s23
    %p37 = scmp.eq.s32.totalorder %s15, 1
    %p38 = por %p36, %p37
    %p40 = scmp.ne.s32.totalorder %s23, %s39
    %p41 = scmp.eq.s32.totalorder %s15, 0
    %p42 = por %p40, %p41
    %s44 = sadd.s32 %s43, 1
    %p47 = scmp.eq.s32.totalorder %s9, 1
    %p48 = scmp.ne.s32.totalorder %s43, %s45
    %p49 = scmp.eq.s32.totalorder %s9, 0
    %p50 = por %p48, %p49
    %p51 = scmp.ne.s32.totalorder %s43, %s45
    %p52 = scmp.eq.s32.totalorder %s14, 1
    %p53 = por %p51, %p52
    %p54 = scmp.ne.s32.totalorder %s45, %s46
    %p55 = scmp.eq.s32.totalorder %s14, 0
    %p56 = por %p54, %p55
    %p57 = scmp.ne.s32.totalorder %s45, %s46
    %p58 = scmp.eq.s32.totalorder %s15, 1
    %p59 = por %p57, %p58
    %p61 = scmp.ne.s32.totalorder %s46, %s60
    %p62 = scmp.eq.s32.totalorder %s15, 0
    %p63 = por %p61, %p62
    %s65 = sadd.s32 %s64, 1
    %p68 = scmp.eq.s32.totalorder %s9, 1
    %p69 = scmp.ne.s32.totalorder %s64, %s66
    %p70 = scmp.eq.s32.totalorder %s9, 0
    %p71 = por %p69, %p70
    %p72 = scmp.ne.s32.totalorder %s64, %s66
    %p73 = scmp.eq.s32.totalorder %s14, 1
    %p74 = por %p72, %p73
    %p75 = scmp.ne.s32.totalorder %s66, %s67
    %p76 = scmp.eq.s32.totalorder %s14, 0
    %p77 = por %p75, %p76
    %p78 = scmp.ne.s32.totalorder %s66, %s67
    %p79 = scmp.eq.s32.totalorder %s15, 1
    %p80 = por %p78, %p79
    %p82 = scmp.ne.s32.totalorder %s67, %s81
    %p83 = scmp.eq.s32.totalorder %s15, 0
    %p84 = por %p82, %p83
    %s85 = ssub.s32 %s9, %s16
    %p86 = scmp.eq.s32.totalorder %s85, 0
    %s88 = sadd.s32 %s87, 1
    %s89 = scalar_select %p86, %s87, %s88
    %p92 = pneg %p86
    %p93 = scmp.eq.s32.totalorder %s9, 1
    %p94 = por %p92, %p93
    %p95 = scmp.ne.s32.totalorder %s87, %s90
    %p96 = scmp.eq.s32.totalorder %s9, 0
    %p97 = por %p95, %p96
    %p98 = scmp.ne.s32.totalorder %s87, %s90
    %p99 = scmp.eq.s32.totalorder %s14, 1
    %p100 = por %p98, %p99
    %p101 = scmp.ne.s32.totalorder %s90, %s91
    %p102 = scmp.eq.s32.totalorder %s14, 0
    %p103 = por %p101, %p102
    %p104 = scmp.ne.s32.totalorder %s90, %s91
    %p105 = scmp.eq.s32.totalorder %s15, 1
    %p106 = por %p104, %p105
    %p108 = scmp.ne.s32.totalorder %s91, %s107
    %p109 = scmp.eq.s32.totalorder %s15, 0
    %p110 = por %p108, %p109
    %p111 = scmp.le.s32.totalorder 1, %s9
    %p112 = scmp.lt.s32.totalorder %s9, 3
    %p113 = pnand %p111, %p112
    %p114 = pneg %p113
    // Predicated region
    $region9: #{generator_forward.5} parent=5 // pred_check
      _
    $region10: #{generator_forward.5} parent=5 // pred_check_branch
      %116 = sbr.rel (%p113) target = $region12
    $region11: #{generator_forward.5} parent=5 // pred_region
      %s117 = ssub.s32 %s9, 1
      // Predicated region
      $region13: #{generator_forward.5} parent=11 // pred_check
        %p118 = pneg %p56
      $region14: #{generator_forward.5} parent=11 // pred_check_branch
        %120 = sbr.rel (%p118) target = $region16
      $region15: #{generator_forward.5} parent=11 // pred_region
        _
      $region16: #{generator_forward.5} parent=11 // pred_fallthru
        _
      // Predicated region
      $region17: #{generator_forward.5} parent=11 // pred_check
        %p121 = pneg %p77
      $region18: #{generator_forward.5} parent=11 // pred_check_branch
        %123 = sbr.rel (%p121) target = $region20
      $region19: #{generator_forward.5} parent=11 // pred_region
        _
      $region20: #{generator_forward.5} parent=11 // pred_fallthru
        _
    $region12: #{generator_forward.5} parent=5 // pred_fallthru
      _
    %p124 = scmp.lt.s32.totalorder %s9, 2
    // Predicated region
    $region21: #{generator_forward.5} parent=5 // pred_check
      %p125 = pneg %p124
    $region22: #{generator_forward.5} parent=5 // pred_check_branch
      %127 = sbr.rel (%p125) target = $region24
    $region23: #{generator_forward.5} parent=5 // pred_region
      // Predicated region
      $region25: #{generator_forward.5} parent=23 // pred_check
        %p128 = pneg %p29
      $region26: #{generator_forward.5} parent=23 // pred_check_branch
        %130 = sbr.rel (%p128) target = $region28
      $region27: #{generator_forward.5} parent=23 // pred_region
        %p131 = scmp.lt.s32.totalorder %s9, 1
        %s132 = scalar_select %p131, %s9, 1
        %s133 = smul.addr %s132, 10
        %s134 = smul.addr %s133, 4
        %s135 = scalar_lea.vmem %s0, %s134
      $region28: #{generator_forward.5} parent=23 // pred_fallthru
        _
    $region24: #{generator_forward.5} parent=5 // pred_fallthru
      _
    %p136 = scmp.le.s32.totalorder 1, %s9
    %p137 = scmp.lt.s32.totalorder %s9, 3
    %p138 = pnand %p136, %p137
    %p139 = pneg %p138
    // Predicated region
    $region29: #{generator_forward.5} parent=5 // pred_check
      _
    $region30: #{generator_forward.5} parent=5 // pred_check_branch
      %141 = sbr.rel (%p138) target = $region32
    $region31: #{generator_forward.5} parent=5 // pred_region
      %s142 = ssub.s32 %s9, 1
      %p143 = scmp.lt.s32.totalorder %s14, 1
      %s144 = scalar_select %p143, %s14, 1
      %s145 = smul.addr %s144, 10
      %s146 = smul.addr %s145, 4
      %s147 = scalar_lea.vmem %s0, %s146
      %p148 = pneg %p35
      %p149 = pneg %p32
      %p150 = pneg %p56
      %p151 = pneg %p53
      %p152 = pneg %p77
      %p153 = pneg %p74
      %p154 = pneg %p103
      %p155 = pneg %p100
      %p156 = scmp.lt.s32.totalorder %s14, 1
      %s157 = scalar_select %p156, %s14, 1
      %s158 = smul.addr %s157, 4
      %s159 = smul.addr %s158, 2
      %s160 = scalar_lea.vmem %s3, %s159
      %p161 = scmp.lt.s32.totalorder %s14, 1
      %s162 = scalar_select %p161, %s14, 1
      %s163 = smul.addr %s162, 10
      %s164 = smul.addr %s163, 4
      %s165 = scalar_lea.vmem %s0, %s164
      %p166 = scmp.lt.s32.totalorder %s14, 1
      %s167 = scalar_select %p166, %s14, 1
      %s168 = smul.addr %s167, 4
      %s169 = smul.addr %s168, 2
      %s170 = scalar_lea.vmem %s3, %s169
      %v171 = vld [vmem:[%s2] sm:$0x1]
      loop: start=0, step=1, limit=4
      $region33: #{generator_forward.5} parent=31 // loop_pre_header
        _
      $region34: #{generator_forward.5} parent=31 // loop_header
        %s173 = sphi 0, %s177
        %p174 = scmp.ge.s32.totalorder %s173, 4
      $region35: #{generator_forward.5} parent=31 // loop_header_branch
        %176 = sbr.rel (%p174) target = $region39
      $region36: #{generator_forward.5} parent=31 // loop_body
        %s178 = smul.u32 %s173, 2
        %s179 = smul.addr %s178, 4
        %s180 = scalar_lea.vmem %s165, %s179
        %v181 = vld [vmem:[%s180] sm:$0x33]
        %v182 = vld [vmem:[%s1] sm:$0xf]
        %v183 = vld [vmem:[%s1 + $0x4] sm:$0xf]
        %v184 = vld [vmem:[%s1 + $0x8] sm:$0xf]
        %v185 = vld [vmem:[%s1 + $0xc] sm:$0xf]
        %v186 = vld [vmem:[%s1 + $0x10] sm:$0xf]
        %v187 = vld [vmem:[%s1 + $0x14] sm:$0xf]
        %v188 = vld [vmem:[%s1 + $0x18] sm:$0xf]
        %v189 = vld [vmem:[%s1 + $0x1c] sm:$0xf]
        %v190 = vld [vmem:[%s1 + $0x20] sm:$0xf]
        %v191 = vld [vmem:[%s1 + $0x24] sm:$0xf]
        %v192 = vld [vmem:[%s1 + $0x28] sm:$0xf]
        %v193 = vld [vmem:[%s1 + $0x2c] sm:$0xf]
        %v194 = vld [vmem:[%s1 + $0x30] sm:$0xf]
        %v195 = vld [vmem:[%s1 + $0x34] sm:$0xf]
        %v196 = vld [vmem:[%s1 + $0x38] sm:$0xf]
        %v197 = vld [vmem:[%s1 + $0x3c] sm:$0xf]
        %v198 = vld [vmem:[%s1 + $0x40] sm:$0xf]
        %v199 = vld [vmem:[%s1 + $0x44] sm:$0xf]
        %v200 = vld [vmem:[%s1 + $0x48] sm:$0xf]
        %v201 = vld [vmem:[%s1 + $0x4c] sm:$0xf]
        %v202 = vld [vmem:[%s1 + $0x50] sm:$0xf]
        %v203 = vld [vmem:[%s1 + $0x54] sm:$0xf]
        %v204 = vld [vmem:[%s1 + $0x58] sm:$0xf]
        %v205 = vld [vmem:[%s1 + $0x5c] sm:$0xf]
        %v206 = vld [vmem:[%s1 + $0x60] sm:$0xf]
        %v207 = vld [vmem:[%s1 + $0x64] sm:$0xf]
        %v208 = vld [vmem:[%s1 + $0x68] sm:$0xf]
        %v209 = vld [vmem:[%s1 + $0x6c] sm:$0xf]
        %v210 = vld [vmem:[%s1 + $0x70] sm:$0xf]
        %v211 = vld [vmem:[%s1 + $0x74] sm:$0xf]
        %v212 = vld [vmem:[%s1 + $0x78] sm:$0xf]
        %v213 = vld [vmem:[%s1 + $0x7c] sm:$0xf]
        %v214 = vld [vmem:[%s180] sm:$0x77]
        %s215 = scalar_lea.vmem %s1, 128
        %v216 = vld [vmem:[%s215] sm:$0xf]
        %v217 = vld [vmem:[%s215 + $0x4] sm:$0xf]
        %v218 = vld [vmem:[%s215 + $0x8] sm:$0xf]
        %v219 = vld [vmem:[%s215 + $0xc] sm:$0xf]
        %v220 = vld [vmem:[%s215 + $0x10] sm:$0xf]
        %v221 = vld [vmem:[%s215 + $0x14] sm:$0xf]
        %v222 = vld [vmem:[%s215 + $0x18] sm:$0xf]
        %v223 = vld [vmem:[%s215 + $0x1c] sm:$0xf]
        %v224 = vld [vmem:[%s215 + $0x20] sm:$0xf]
        %v225 = vld [vmem:[%s215 + $0x24] sm:$0xf]
        %v226 = vld [vmem:[%s215 + $0x28] sm:$0xf]
        %v227 = vld [vmem:[%s215 + $0x2c] sm:$0xf]
        %v228 = vld [vmem:[%s215 + $0x30] sm:$0xf]
        %v229 = vld [vmem:[%s215 + $0x34] sm:$0xf]
        %v230 = vld [vmem:[%s215 + $0x38] sm:$0xf]
        %v231 = vld [vmem:[%s215 + $0x3c] sm:$0xf]
        %v232 = vld [vmem:[%s215 + $0x40] sm:$0xf]
        %v233 = vld [vmem:[%s215 + $0x44] sm:$0xf]
        %v234 = vld [vmem:[%s215 + $0x48] sm:$0xf]
        %v235 = vld [vmem:[%s215 + $0x4c] sm:$0xf]
        %v236 = vld [vmem:[%s215 + $0x50] sm:$0xf]
        %v237 = vld [vmem:[%s215 + $0x54] sm:$0xf]
        %v238 = vld [vmem:[%s215 + $0x58] sm:$0xf]
        %v239 = vld [vmem:[%s215 + $0x5c] sm:$0xf]
        %v240 = vld [vmem:[%s215 + $0x60] sm:$0xf]
        %v241 = vld [vmem:[%s215 + $0x64] sm:$0xf]
        %v242 = vld [vmem:[%s215 + $0x68] sm:$0xf]
        %v243 = vld [vmem:[%s215 + $0x6c] sm:$0xf]
        %v244 = vld [vmem:[%s215 + $0x70] sm:$0xf]
        %v245 = vld [vmem:[%s215 + $0x74] sm:$0xf]
        %v246 = vld [vmem:[%s215 + $0x78] sm:$0xf]
        %v247 = vld [vmem:[%s215 + $0x7c] sm:$0xf]
        %v249 = vunpack.c.l.b16 %v214
        %v250 = vunpack.c.h.b16 %v214
        %v251 = vpack.c.b16 %v249, %v249
        %v252 = vpack.c.b16 %v250, %v250
        %v254 = vshrl.u32 %v251, 16
        %v256 = vshll.u32 %v251, 16
        %v258 = vrot.slane %v256, 1
        %v259 = vor.u32 %v254, %v258
        %v261 = vshrl.u32 %v252, 16
        %v263 = vshll.u32 %v252, 16
        %v265 = vrot.slane %v263, 1
        %v266 = vor.u32 %v261, %v265
        %v301 = vunpack.c.l.b16 %v216
        %v302 = vunpack.c.l.b16 %v217
        %v303 = vunpack.c.l.b16 %v218
        %v304 = vunpack.c.l.b16 %v219
        %v305 = vunpack.c.l.b16 %v220
        %v306 = vunpack.c.l.b16 %v221
        %v307 = vunpack.c.l.b16 %v222
        %v308 = vunpack.c.l.b16 %v223
        %v309 = vunpack.c.l.b16 %v224
        %v310 = vunpack.c.l.b16 %v225
        %v311 = vunpack.c.l.b16 %v226
        %v312 = vunpack.c.l.b16 %v227
        %v313 = vunpack.c.l.b16 %v228
        %v314 = vunpack.c.l.b16 %v229
        %v315 = vunpack.c.l.b16 %v230
        %v316 = vunpack.c.l.b16 %v231
        %v317 = vunpack.c.l.b16 %v232
        %v318 = vunpack.c.l.b16 %v233
        %v319 = vunpack.c.l.b16 %v234
        %v320 = vunpack.c.l.b16 %v235
        %v321 = vunpack.c.l.b16 %v236
        %v322 = vunpack.c.l.b16 %v237
        %v323 = vunpack.c.l.b16 %v238
        %v324 = vunpack.c.l.b16 %v239
        %v325 = vunpack.c.l.b16 %v240
        %v326 = vunpack.c.l.b16 %v241
        %v327 = vunpack.c.l.b16 %v242
        %v328 = vunpack.c.l.b16 %v243
        %v329 = vunpack.c.l.b16 %v244
        %v330 = vunpack.c.l.b16 %v245
        %v331 = vunpack.c.l.b16 %v246
        %v332 = vunpack.c.l.b16 %v247
        %v333 = vpack.c.b16 %v302, %v301
        %v334 = vpack.c.b16 %v304, %v303
        %v335 = vpack.c.b16 %v306, %v305
        %v336 = vpack.c.b16 %v308, %v307
        %v337 = vpack.c.b16 %v310, %v309
        %v338 = vpack.c.b16 %v312, %v311
        %v339 = vpack.c.b16 %v314, %v313
        %v340 = vpack.c.b16 %v316, %v315
        %v341 = vpack.c.b16 %v318, %v317
        %v342 = vpack.c.b16 %v320, %v319
        %v343 = vpack.c.b16 %v322, %v321
        %v344 = vpack.c.b16 %v324, %v323
        %v345 = vpack.c.b16 %v326, %v325
        %v346 = vpack.c.b16 %v328, %v327
        %v347 = vpack.c.b16 %v330, %v329
        %v348 = vpack.c.b16 %v332, %v331
        %365 = vmatpush.bf16.msra.mxu0 %v340
        %366 = vmatpush.bf16.msra.mxu0 %v339
        %367 = vmatpush.bf16.msra.mxu0 %v338
        %368 = vmatpush.bf16.msra.mxu0 %v337
        %369 = vmatpush.bf16.msra.mxu0 %v336
        %370 = vmatpush.bf16.msra.mxu0 %v335
        %371 = vmatpush.bf16.msra.mxu0 %v334
        %372 = vmatpush.bf16.msra.mxu0 %v333
        %373 = vmatmul.bf16.gmra.mxu0 %v259
        %v374 = vpop.f32.mrf.mxu0
        %v375 = vadd.f32 0.0, %v374
        %v376 = vpop.f32.mrf.mxu0
        %377 = vdwg.mxu0
        %378 = vmatpush.bf16.msra.mxu0 %v348
        %379 = vmatpush.bf16.msra.mxu0 %v347
        %380 = vmatpush.bf16.msra.mxu0 %v346
        %381 = vmatpush.bf16.msra.mxu0 %v345
        %382 = vmatpush.bf16.msra.mxu0 %v344
        %383 = vmatpush.bf16.msra.mxu0 %v343
        %384 = vmatpush.bf16.msra.mxu0 %v342
        %385 = vmatpush.bf16.msra.mxu0 %v341
        %386 = vmatmul.bf16.gmra.mxu0 %v266
        %v387 = vpop.f32.mrf.mxu0
        %v388 = vadd.f32 %v375, %v387
        %v389 = vpop.f32.mrf.mxu0
        %390 = vdwg.mxu0
        %v392 = vunpack.c.l.b16 %v181
        %v393 = vunpack.c.h.b16 %v181
        %v394 = vpack.c.b16 %v392, %v392
        %v395 = vpack.c.b16 %v393, %v393
        %v430 = vunpack.c.l.b16 %v182
        %v431 = vunpack.c.l.b16 %v183
        %v432 = vunpack.c.l.b16 %v184
        %v433 = vunpack.c.l.b16 %v185
        %v434 = vunpack.c.l.b16 %v186
        %v435 = vunpack.c.l.b16 %v187
        %v436 = vunpack.c.l.b16 %v188
        %v437 = vunpack.c.l.b16 %v189
        %v438 = vunpack.c.l.b16 %v190
        %v439 = vunpack.c.l.b16 %v191
        %v440 = vunpack.c.l.b16 %v192
        %v441 = vunpack.c.l.b16 %v193
        %v442 = vunpack.c.l.b16 %v194
        %v443 = vunpack.c.l.b16 %v195
        %v444 = vunpack.c.l.b16 %v196
        %v445 = vunpack.c.l.b16 %v197
        %v446 = vunpack.c.l.b16 %v198
        %v447 = vunpack.c.l.b16 %v199
        %v448 = vunpack.c.l.b16 %v200
        %v449 = vunpack.c.l.b16 %v201
        %v450 = vunpack.c.l.b16 %v202
        %v451 = vunpack.c.l.b16 %v203
        %v452 = vunpack.c.l.b16 %v204
        %v453 = vunpack.c.l.b16 %v205
        %v454 = vunpack.c.l.b16 %v206
        %v455 = vunpack.c.l.b16 %v207
        %v456 = vunpack.c.l.b16 %v208
        %v457 = vunpack.c.l.b16 %v209
        %v458 = vunpack.c.l.b16 %v210
        %v459 = vunpack.c.l.b16 %v211
        %v460 = vunpack.c.l.b16 %v212
        %v461 = vunpack.c.l.b16 %v213
        %v462 = vpack.c.b16 %v431, %v430
        %v463 = vpack.c.b16 %v433, %v432
        %v464 = vpack.c.b16 %v435, %v434
        %v465 = vpack.c.b16 %v437, %v436
        %v466 = vpack.c.b16 %v439, %v438
        %v467 = vpack.c.b16 %v441, %v440
        %v468 = vpack.c.b16 %v443, %v442
        %v469 = vpack.c.b16 %v445, %v444
        %v470 = vpack.c.b16 %v447, %v446
        %v471 = vpack.c.b16 %v449, %v448
        %v472 = vpack.c.b16 %v451, %v450
        %v473 = vpack.c.b16 %v453, %v452
        %v474 = vpack.c.b16 %v455, %v454
        %v475 = vpack.c.b16 %v457, %v456
        %v476 = vpack.c.b16 %v459, %v458
        %v477 = vpack.c.b16 %v461, %v460
        %494 = vmatpush.bf16.msra.mxu0 %v469
        %495 = vmatpush.bf16.msra.mxu0 %v468
        %496 = vmatpush.bf16.msra.mxu0 %v467
        %497 = vmatpush.bf16.msra.mxu0 %v466
        %498 = vmatpush.bf16.msra.mxu0 %v465
        %499 = vmatpush.bf16.msra.mxu0 %v464
        %500 = vmatpush.bf16.msra.mxu0 %v463
        %501 = vmatpush.bf16.msra.mxu0 %v462
        %502 = vmatmul.bf16.gmra.mxu0 %v394
        %v503 = vpop.f32.mrf.mxu0
        %v504 = vadd.f32 %v388, %v503
        %v505 = vpop.f32.mrf.mxu0
        %506 = vdwg.mxu0
        %507 = vmatpush.bf16.msra.mxu0 %v477
        %508 = vmatpush.bf16.msra.mxu0 %v476
        %509 = vmatpush.bf16.msra.mxu0 %v475
        %510 = vmatpush.bf16.msra.mxu0 %v474
        %511 = vmatpush.bf16.msra.mxu0 %v473
        %512 = vmatpush.bf16.msra.mxu0 %v472
        %513 = vmatpush.bf16.msra.mxu0 %v471
        %514 = vmatpush.bf16.msra.mxu0 %v470
        %515 = vmatmul.bf16.gmra.mxu0 %v395
        %v516 = vpop.f32.mrf.mxu0
        %v517 = vadd.f32 %v504, %v516
        %v518 = vpop.f32.mrf.mxu0
        %519 = vdwg.mxu0
        %s520 = sadd.s32 %s173, 1
        %s521 = smul.u32 %s520, 2
        %s522 = smul.addr %s521, 4
        %s523 = scalar_lea.vmem %s165, %s522
        %v524 = vld [vmem:[%s523] sm:$0x33]
        %s525 = scalar_lea.vmem %s1, 256
        %v526 = vld [vmem:[%s525] sm:$0xf]
        %v527 = vld [vmem:[%s525 + $0x4] sm:$0xf]
        %v528 = vld [vmem:[%s525 + $0x8] sm:$0xf]
        %v529 = vld [vmem:[%s525 + $0xc] sm:$0xf]
        %v530 = vld [vmem:[%s525 + $0x10] sm:$0xf]
        %v531 = vld [vmem:[%s525 + $0x14] sm:$0xf]
        %v532 = vld [vmem:[%s525 + $0x18] sm:$0xf]
        %v533 = vld [vmem:[%s525 + $0x1c] sm:$0xf]
        %v534 = vld [vmem:[%s525 + $0x20] sm:$0xf]
        %v535 = vld [vmem:[%s525 + $0x24] sm:$0xf]
        %v536 = vld [vmem:[%s525 + $0x28] sm:$0xf]
        %v537 = vld [vmem:[%s525 + $0x2c] sm:$0xf]
        %v538 = vld [vmem:[%s525 + $0x30] sm:$0xf]
        %v539 = vld [vmem:[%s525 + $0x34] sm:$0xf]
        %v540 = vld [vmem:[%s525 + $0x38] sm:$0xf]
        %v541 = vld [vmem:[%s525 + $0x3c] sm:$0xf]
        %v542 = vld [vmem:[%s525 + $0x40] sm:$0xf]
        %v543 = vld [vmem:[%s525 + $0x44] sm:$0xf]
        %v544 = vld [vmem:[%s525 + $0x48] sm:$0xf]
        %v545 = vld [vmem:[%s525 + $0x4c] sm:$0xf]
        %v546 = vld [vmem:[%s525 + $0x50] sm:$0xf]
        %v547 = vld [vmem:[%s525 + $0x54] sm:$0xf]
        %v548 = vld [vmem:[%s525 + $0x58] sm:$0xf]
        %v549 = vld [vmem:[%s525 + $0x5c] sm:$0xf]
        %v550 = vld [vmem:[%s525 + $0x60] sm:$0xf]
        %v551 = vld [vmem:[%s525 + $0x64] sm:$0xf]
        %v552 = vld [vmem:[%s525 + $0x68] sm:$0xf]
        %v553 = vld [vmem:[%s525 + $0x6c] sm:$0xf]
        %v554 = vld [vmem:[%s525 + $0x70] sm:$0xf]
        %v555 = vld [vmem:[%s525 + $0x74] sm:$0xf]
        %v556 = vld [vmem:[%s525 + $0x78] sm:$0xf]
        %v557 = vld [vmem:[%s525 + $0x7c] sm:$0xf]
        %v559 = vunpack.c.l.b16 %v524
        %v560 = vunpack.c.h.b16 %v524
        %v561 = vpack.c.b16 %v559, %v559
        %v562 = vpack.c.b16 %v560, %v560
        %v597 = vunpack.c.l.b16 %v526
        %v598 = vunpack.c.l.b16 %v527
        %v599 = vunpack.c.l.b16 %v528
        %v600 = vunpack.c.l.b16 %v529
        %v601 = vunpack.c.l.b16 %v530
        %v602 = vunpack.c.l.b16 %v531
        %v603 = vunpack.c.l.b16 %v532
        %v604 = vunpack.c.l.b16 %v533
        %v605 = vunpack.c.l.b16 %v534
        %v606 = vunpack.c.l.b16 %v535
        %v607 = vunpack.c.l.b16 %v536
        %v608 = vunpack.c.l.b16 %v537
        %v609 = vunpack.c.l.b16 %v538
        %v610 = vunpack.c.l.b16 %v539
        %v611 = vunpack.c.l.b16 %v540
        %v612 = vunpack.c.l.b16 %v541
        %v613 = vunpack.c.l.b16 %v542
        %v614 = vunpack.c.l.b16 %v543
        %v615 = vunpack.c.l.b16 %v544
        %v616 = vunpack.c.l.b16 %v545
        %v617 = vunpack.c.l.b16 %v546
        %v618 = vunpack.c.l.b16 %v547
        %v619 = vunpack.c.l.b16 %v548
        %v620 = vunpack.c.l.b16 %v549
        %v621 = vunpack.c.l.b16 %v550
        %v622 = vunpack.c.l.b16 %v551
        %v623 = vunpack.c.l.b16 %v552
        %v624 = vunpack.c.l.b16 %v553
        %v625 = vunpack.c.l.b16 %v554
        %v626 = vunpack.c.l.b16 %v555
        %v627 = vunpack.c.l.b16 %v556
        %v628 = vunpack.c.l.b16 %v557
        %v629 = vpack.c.b16 %v598, %v597
        %v630 = vpack.c.b16 %v600, %v599
        %v631 = vpack.c.b16 %v602, %v601
        %v632 = vpack.c.b16 %v604, %v603
        %v633 = vpack.c.b16 %v606, %v605
        %v634 = vpack.c.b16 %v608, %v607
        %v635 = vpack.c.b16 %v610, %v609
        %v636 = vpack.c.b16 %v612, %v611
        %v637 = vpack.c.b16 %v614, %v613
        %v638 = vpack.c.b16 %v616, %v615
        %v639 = vpack.c.b16 %v618, %v617
        %v640 = vpack.c.b16 %v620, %v619
        %v641 = vpack.c.b16 %v622, %v621
        %v642 = vpack.c.b16 %v624, %v623
        %v643 = vpack.c.b16 %v626, %v625
        %v644 = vpack.c.b16 %v628, %v627
        %661 = vmatpush.bf16.msra.mxu0 %v636
        %662 = vmatpush.bf16.msra.mxu0 %v635
        %663 = vmatpush.bf16.msra.mxu0 %v634
        %664 = vmatpush.bf16.msra.mxu0 %v633
        %665 = vmatpush.bf16.msra.mxu0 %v632
        %666 = vmatpush.bf16.msra.mxu0 %v631
        %667 = vmatpush.bf16.msra.mxu0 %v630
        %668 = vmatpush.bf16.msra.mxu0 %v629
        %669 = vmatmul.bf16.gmra.mxu0 %v561
        %v670 = vpop.f32.mrf.mxu0
        %v671 = vadd.f32 0.0, %v670
        %v672 = vpop.f32.mrf.mxu0
        %673 = vdwg.mxu0
        %674 = vmatpush.bf16.msra.mxu0 %v644
        %675 = vmatpush.bf16.msra.mxu0 %v643
        %676 = vmatpush.bf16.msra.mxu0 %v642
        %677 = vmatpush.bf16.msra.mxu0 %v641
        %678 = vmatpush.bf16.msra.mxu0 %v640
        %679 = vmatpush.bf16.msra.mxu0 %v639
        %680 = vmatpush.bf16.msra.mxu0 %v638
        %681 = vmatpush.bf16.msra.mxu0 %v637
        %682 = vmatmul.bf16.gmra.mxu0 %v562
        %v683 = vpop.f32.mrf.mxu0
        %v684 = vadd.f32 %v671, %v683
        %v685 = vpop.f32.mrf.mxu0
        %686 = vdwg.mxu0
        %v687 = vadd.f32 %v517, %v684
        %v688 = vld [vmem:[%s523] sm:$0x77]
        %s689 = scalar_lea.vmem %s1, 384
        %v690 = vld [vmem:[%s689] sm:$0xf]
        %v691 = vld [vmem:[%s689 + $0x4] sm:$0xf]
        %v692 = vld [vmem:[%s689 + $0x8] sm:$0xf]
        %v693 = vld [vmem:[%s689 + $0xc] sm:$0xf]
        %v694 = vld [vmem:[%s689 + $0x10] sm:$0xf]
        %v695 = vld [vmem:[%s689 + $0x14] sm:$0xf]
        %v696 = vld [vmem:[%s689 + $0x18] sm:$0xf]
        %v697 = vld [vmem:[%s689 + $0x1c] sm:$0xf]
        %v698 = vld [vmem:[%s689 + $0x20] sm:$0xf]
        %v699 = vld [vmem:[%s689 + $0x24] sm:$0xf]
        %v700 = vld [vmem:[%s689 + $0x28] sm:$0xf]
        %v701 = vld [vmem:[%s689 + $0x2c] sm:$0xf]
        %v702 = vld [vmem:[%s689 + $0x30] sm:$0xf]
        %v703 = vld [vmem:[%s689 + $0x34] sm:$0xf]
        %v704 = vld [vmem:[%s689 + $0x38] sm:$0xf]
        %v705 = vld [vmem:[%s689 + $0x3c] sm:$0xf]
        %v706 = vld [vmem:[%s689 + $0x40] sm:$0xf]
        %v707 = vld [vmem:[%s689 + $0x44] sm:$0xf]
        %v708 = vld [vmem:[%s689 + $0x48] sm:$0xf]
        %v709 = vld [vmem:[%s689 + $0x4c] sm:$0xf]
        %v710 = vld [vmem:[%s689 + $0x50] sm:$0xf]
        %v711 = vld [vmem:[%s689 + $0x54] sm:$0xf]
        %v712 = vld [vmem:[%s689 + $0x58] sm:$0xf]
        %v713 = vld [vmem:[%s689 + $0x5c] sm:$0xf]
        %v714 = vld [vmem:[%s689 + $0x60] sm:$0xf]
        %v715 = vld [vmem:[%s689 + $0x64] sm:$0xf]
        %v716 = vld [vmem:[%s689 + $0x68] sm:$0xf]
        %v717 = vld [vmem:[%s689 + $0x6c] sm:$0xf]
        %v718 = vld [vmem:[%s689 + $0x70] sm:$0xf]
        %v719 = vld [vmem:[%s689 + $0x74] sm:$0xf]
        %v720 = vld [vmem:[%s689 + $0x78] sm:$0xf]
        %v721 = vld [vmem:[%s689 + $0x7c] sm:$0xf]
        %v723 = vunpack.c.l.b16 %v688
        %v724 = vunpack.c.h.b16 %v688
        %v725 = vpack.c.b16 %v723, %v723
        %v726 = vpack.c.b16 %v724, %v724
        %v728 = vshrl.u32 %v725, 16
        %v730 = vshll.u32 %v725, 16
        %v732 = vrot.slane %v730, 1
        %v733 = vor.u32 %v728, %v732
        %v735 = vshrl.u32 %v726, 16
        %v737 = vshll.u32 %v726, 16
        %v739 = vrot.slane %v737, 1
        %v740 = vor.u32 %v735, %v739
        %v775 = vunpack.c.l.b16 %v690
        %v776 = vunpack.c.l.b16 %v691
        %v777 = vunpack.c.l.b16 %v692
        %v778 = vunpack.c.l.b16 %v693
        %v779 = vunpack.c.l.b16 %v694
        %v780 = vunpack.c.l.b16 %v695
        %v781 = vunpack.c.l.b16 %v696
        %v782 = vunpack.c.l.b16 %v697
        %v783 = vunpack.c.l.b16 %v698
        %v784 = vunpack.c.l.b16 %v699
        %v785 = vunpack.c.l.b16 %v700
        %v786 = vunpack.c.l.b16 %v701
        %v787 = vunpack.c.l.b16 %v702
        %v788 = vunpack.c.l.b16 %v703
        %v789 = vunpack.c.l.b16 %v704
        %v790 = vunpack.c.l.b16 %v705
        %v791 = vunpack.c.l.b16 %v706
        %v792 = vunpack.c.l.b16 %v707
        %v793 = vunpack.c.l.b16 %v708
        %v794 = vunpack.c.l.b16 %v709
        %v795 = vunpack.c.l.b16 %v710
        %v796 = vunpack.c.l.b16 %v711
        %v797 = vunpack.c.l.b16 %v712
        %v798 = vunpack.c.l.b16 %v713
        %v799 = vunpack.c.l.b16 %v714
        %v800 = vunpack.c.l.b16 %v715
        %v801 = vunpack.c.l.b16 %v716
        %v802 = vunpack.c.l.b16 %v717
        %v803 = vunpack.c.l.b16 %v718
        %v804 = vunpack.c.l.b16 %v719
        %v805 = vunpack.c.l.b16 %v720
        %v806 = vunpack.c.l.b16 %v721
        %v807 = vpack.c.b16 %v776, %v775
        %v808 = vpack.c.b16 %v778, %v777
        %v809 = vpack.c.b16 %v780, %v779
        %v810 = vpack.c.b16 %v782, %v781
        %v811 = vpack.c.b16 %v784, %v783
        %v812 = vpack.c.b16 %v786, %v785
        %v813 = vpack.c.b16 %v788, %v787
        %v814 = vpack.c.b16 %v790, %v789
        %v815 = vpack.c.b16 %v792, %v791
        %v816 = vpack.c.b16 %v794, %v793
        %v817 = vpack.c.b16 %v796, %v795
        %v818 = vpack.c.b16 %v798, %v797
        %v819 = vpack.c.b16 %v800, %v799
        %v820 = vpack.c.b16 %v802, %v801
        %v821 = vpack.c.b16 %v804, %v803
        %v822 = vpack.c.b16 %v806, %v805
        %839 = vmatpush.bf16.msra.mxu0 %v814
        %840 = vmatpush.bf16.msra.mxu0 %v813
        %841 = vmatpush.bf16.msra.mxu0 %v812
        %842 = vmatpush.bf16.msra.mxu0 %v811
        %843 = vmatpush.bf16.msra.mxu0 %v810
        %844 = vmatpush.bf16.msra.mxu0 %v809
        %845 = vmatpush.bf16.msra.mxu0 %v808
        %846 = vmatpush.bf16.msra.mxu0 %v807
        %847 = vmatmul.bf16.gmra.mxu0 %v733
        %v848 = vpop.f32.mrf.mxu0
        %v849 = vadd.f32 0.0, %v848
        %v850 = vpop.f32.mrf.mxu0
        %851 = vdwg.mxu0
        %852 = vmatpush.bf16.msra.mxu0 %v822
        %853 = vmatpush.bf16.msra.mxu0 %v821
        %854 = vmatpush.bf16.msra.mxu0 %v820
        %855 = vmatpush.bf16.msra.mxu0 %v819
        %856 = vmatpush.bf16.msra.mxu0 %v818
        %857 = vmatpush.bf16.msra.mxu0 %v817
        %858 = vmatpush.bf16.msra.mxu0 %v816
        %859 = vmatpush.bf16.msra.mxu0 %v815
        %860 = vmatmul.bf16.gmra.mxu0 %v740
        %v861 = vpop.f32.mrf.mxu0
        %v862 = vadd.f32 %v849, %v861
        %v863 = vpop.f32.mrf.mxu0
        %864 = vdwg.mxu0
        %v865 = vadd.f32 %v687, %v862
        %v867 = vperm.slane %v171, 0
        %v869 = vadd.f32 %v865, %v867
        %v870 = vmax.f32 %v869, 0.0
        %v871 = vpack.c.bf16 %v870, %v870
        %s872 = smul.addr %s173, 2
        %s873 = scalar_lea.vmem %s170, %s872
        %874 = vst [vmem:[%s873] sm:$0x3] %v871
      $region37: #{generator_forward.5} parent=31 // loop_footer
        %s177 = sadd.s32 1, %s173
      $region38: #{generator_forward.5} parent=31 // loop_footer_branch
        %172 = sbr.rel target = $region34
      $region39: #{generator_forward.5} parent=31 // loop_exit
        _
      %p875 = scmp.lt.s32.totalorder %s14, 1
      %s876 = scalar_select %p875, %s14, 1
      %s877 = smul.addr %s876, 4
      %s878 = smul.addr %s877, 2
      %s879 = scalar_lea.vmem %s3, %s878
      // Predicated region
      $region40: #{generator_forward.5} parent=31 // pred_check
        %p880 = pneg %p100
      $region41: #{generator_forward.5} parent=31 // pred_check_branch
        %882 = sbr.rel (%p880) target = $region43
      $region42: #{generator_forward.5} parent=31 // pred_region
        _
      $region43: #{generator_forward.5} parent=31 // pred_fallthru
        _
    $region32: #{generator_forward.5} parent=5 // pred_fallthru
      _
    %p883 = scmp.le.s32.totalorder 2, %s9
    // Predicated region
    $region44: #{generator_forward.5} parent=5 // pred_check
      %p884 = pneg %p883
    $region45: #{generator_forward.5} parent=5 // pred_check_branch
      %886 = sbr.rel (%p884) target = $region47
    $region46: #{generator_forward.5} parent=5 // pred_region
      %s887 = ssub.s32 %s9, 2
      // Predicated region
      $region48: #{generator_forward.5} parent=46 // pred_check
        %p888 = pneg %p106
      $region49: #{generator_forward.5} parent=46 // pred_check_branch
        %890 = sbr.rel (%p888) target = $region51
      $region50: #{generator_forward.5} parent=46 // pred_region
        %p891 = scmp.lt.s32.totalorder %s15, 1
        %s892 = scalar_select %p891, %s15, 1
        %s893 = smul.addr %s892, 4
        %s894 = smul.addr %s893, 2
        %s895 = scalar_lea.vmem %s3, %s894
      $region51: #{generator_forward.5} parent=46 // pred_fallthru
        _
    $region47: #{generator_forward.5} parent=5 // pred_fallthru
      _
  $region6: #{generator_forward.5} parent=0 // loop_footer
    %s13 = sadd.s32 1, %s9
  $region7: #{generator_forward.5} parent=0 // loop_footer_branch
    %8 = sbr.rel target = $region3
  $region8: #{generator_forward.5} parent=0 // loop_exit
    _

// kernel: generator_forward.6
$region0: #{generator_forward.6}
  #allocation0 [shape = 'u32[]', space=smem, size = 0x4, offset = 0x4, fixed_abs, tag = 'smem constant byte address 0x4 - core index']
  #allocation1 [shape = 'u32[72,128]{1,0:T(1,128)}', space=vmem, size = 0x9000, scoped, tag = 'internal scratch']
  %s0 = inlined_call_operand.vmem [shape: bf16[2,6,6,128], index: 0, kind: input, shape index: {}]
  %s1 = inlined_call_operand.vmem [shape: bf16[4,128,256], index: 1, kind: input, shape index: {}]
  %s2 = inlined_call_operand.vmem [shape: f32[1,256], index: 2, kind: input, shape index: {}]
  %s3 = inlined_call_operand.vmem [shape: bf16[2,5,5,256], index: 3, kind: output, shape index: {}]
  %s4 = sld [smem:[#allocation0]]
  $region52: #{generator_forward.6} parent=0
    _
  %s6 = ssub.s32 1, %s4
  %s7 = scalar_select 0, %s6, %s4
  loop: start=0, step=1, limit=4
  $region2: #{generator_forward.6} parent=0 // loop_pre_header
    _
  $region3: #{generator_forward.6} parent=0 // loop_header
    %s9 = sphi 0, %s13
    %p10 = scmp.ge.s32.totalorder %s9, 4
    %s19 = sphi 0, %s21
    %s22 = sphi 0, %s19
    %s23 = sphi 0, %s22
    %s39 = sphi 0, %s23
    %s43 = sphi 0, %s43
    %s45 = sphi 0, %s43
    %s46 = sphi 0, %s45
    %s60 = sphi 0, %s46
    %s64 = sphi 0, %s64
    %s66 = sphi 0, %s64
    %s67 = sphi 0, %s66
    %s81 = sphi 0, %s67
    %s87 = sphi 0, %s89
    %s90 = sphi 0, %s87
    %s91 = sphi 0, %s90
    %s107 = sphi 0, %s91
  $region4: #{generator_forward.6} parent=0 // loop_header_branch
    %12 = sbr.rel (%p10) target = $region8
  $region5: #{generator_forward.6} parent=0 // loop_body
    %s14 = ssub.s32 %s9, 1
    %s15 = ssub.s32 %s9, 2
    %s16 = sadd.s32 %s9, 1
    %s17 = ssub.s32 %s9, %s16
    %p18 = scmp.eq.s32.totalorder %s17, 0
    %s20 = sadd.s32 %s19, 1
    %s21 = scalar_select %p18, %s19, %s20
    %p24 = pneg %p18
    %p25 = scmp.eq.s32.totalorder %s9, 1
    %p26 = por %p24, %p25
    %p27 = scmp.ne.s32.totalorder %s19, %s22
    %p28 = scmp.eq.s32.totalorder %s9, 0
    %p29 = por %p27, %p28
    %p30 = scmp.ne.s32.totalorder %s19, %s22
    %p31 = scmp.eq.s32.totalorder %s14, 1
    %p32 = por %p30, %p31
    %p33 = scmp.ne.s32.totalorder %s22, %s23
    %p34 = scmp.eq.s32.totalorder %s14, 0
    %p35 = por %p33, %p34
    %p36 = scmp.ne.s32.totalorder %s22, %s23
    %p37 = scmp.eq.s32.totalorder %s15, 1
    %p38 = por %p36, %p37
    %p40 = scmp.ne.s32.totalorder %s23, %s39
    %p41 = scmp.eq.s32.totalorder %s15, 0
    %p42 = por %p40, %p41
    %s44 = sadd.s32 %s43, 1
    %p47 = scmp.eq.s32.totalorder %s9, 1
    %p48 = scmp.ne.s32.totalorder %s43, %s45
    %p49 = scmp.eq.s32.totalorder %s9, 0
    %p50 = por %p48, %p49
    %p51 = scmp.ne.s32.totalorder %s43, %s45
    %p52 = scmp.eq.s32.totalorder %s14, 1
    %p53 = por %p51, %p52
    %p54 = scmp.ne.s32.totalorder %s45, %s46
    %p55 = scmp.eq.s32.totalorder %s14, 0
    %p56 = por %p54, %p55
    %p57 = scmp.ne.s32.totalorder %s45, %s46
    %p58 = scmp.eq.s32.totalorder %s15, 1
    %p59 = por %p57, %p58
    %p61 = scmp.ne.s32.totalorder %s46, %s60
    %p62 = scmp.eq.s32.totalorder %s15, 0
    %p63 = por %p61, %p62
    %s65 = sadd.s32 %s64, 1
    %p68 = scmp.eq.s32.totalorder %s9, 1
    %p69 = scmp.ne.s32.totalorder %s64, %s66
    %p70 = scmp.eq.s32.totalorder %s9, 0
    %p71 = por %p69, %p70
    %p72 = scmp.ne.s32.totalorder %s64, %s66
    %p73 = scmp.eq.s32.totalorder %s14, 1
    %p74 = por %p72, %p73
    %p75 = scmp.ne.s32.totalorder %s66, %s67
    %p76 = scmp.eq.s32.totalorder %s14, 0
    %p77 = por %p75, %p76
    %p78 = scmp.ne.s32.totalorder %s66, %s67
    %p79 = scmp.eq.s32.totalorder %s15, 1
    %p80 = por %p78, %p79
    %p82 = scmp.ne.s32.totalorder %s67, %s81
    %p83 = scmp.eq.s32.totalorder %s15, 0
    %p84 = por %p82, %p83
    %s85 = ssub.s32 %s9, %s16
    %p86 = scmp.eq.s32.totalorder %s85, 0
    %s88 = sadd.s32 %s87, 1
    %s89 = scalar_select %p86, %s87, %s88
    %p92 = pneg %p86
    %p93 = scmp.eq.s32.totalorder %s9, 1
    %p94 = por %p92, %p93
    %p95 = scmp.ne.s32.totalorder %s87, %s90
    %p96 = scmp.eq.s32.totalorder %s9, 0
    %p97 = por %p95, %p96
    %p98 = scmp.ne.s32.totalorder %s87, %s90
    %p99 = scmp.eq.s32.totalorder %s14, 1
    %p100 = por %p98, %p99
    %p101 = scmp.ne.s32.totalorder %s90, %s91
    %p102 = scmp.eq.s32.totalorder %s14, 0
    %p103 = por %p101, %p102
    %p104 = scmp.ne.s32.totalorder %s90, %s91
    %p105 = scmp.eq.s32.totalorder %s15, 1
    %p106 = por %p104, %p105
    %p108 = scmp.ne.s32.totalorder %s91, %s107
    %p109 = scmp.eq.s32.totalorder %s15, 0
    %p110 = por %p108, %p109
    %p111 = scmp.le.s32.totalorder 1, %s9
    %p112 = scmp.lt.s32.totalorder %s9, 3
    %p113 = pnand %p111, %p112
    %p114 = pneg %p113
    // Predicated region
    $region9: #{generator_forward.6} parent=5 // pred_check
      _
    $region10: #{generator_forward.6} parent=5 // pred_check_branch
      %116 = sbr.rel (%p113) target = $region12
    $region11: #{generator_forward.6} parent=5 // pred_region
      %s117 = ssub.s32 %s9, 1
      // Predicated region
      $region13: #{generator_forward.6} parent=11 // pred_check
        %p118 = pneg %p56
      $region14: #{generator_forward.6} parent=11 // pred_check_branch
        %120 = sbr.rel (%p118) target = $region16
      $region15: #{generator_forward.6} parent=11 // pred_region
        _
      $region16: #{generator_forward.6} parent=11 // pred_fallthru
        _
      // Predicated region
      $region17: #{generator_forward.6} parent=11 // pred_check
        %p121 = pneg %p77
      $region18: #{generator_forward.6} parent=11 // pred_check_branch
        %123 = sbr.rel (%p121) target = $region20
      $region19: #{generator_forward.6} parent=11 // pred_region
        _
      $region20: #{generator_forward.6} parent=11 // pred_fallthru
        _
    $region12: #{generator_forward.6} parent=5 // pred_fallthru
      _
    %p124 = scmp.lt.s32.totalorder %s9, 2
    // Predicated region
    $region21: #{generator_forward.6} parent=5 // pred_check
      %p125 = pneg %p124
    $region22: #{generator_forward.6} parent=5 // pred_check_branch
      %127 = sbr.rel (%p125) target = $region24
    $region23: #{generator_forward.6} parent=5 // pred_region
      // Predicated region
      $region25: #{generator_forward.6} parent=23 // pred_check
        %p128 = pneg %p29
      $region26: #{generator_forward.6} parent=23 // pred_check_branch
        %130 = sbr.rel (%p128) target = $region28
      $region27: #{generator_forward.6} parent=23 // pred_region
        %p131 = scmp.lt.s32.totalorder %s9, 1
        %s132 = scalar_select %p131, %s9, 1
        %s133 = smul.addr %s132, 6
        %s134 = smul.addr %s133, 4
        %s135 = scalar_lea.vmem %s0, %s134
      $region28: #{generator_forward.6} parent=23 // pred_fallthru
        _
    $region24: #{generator_forward.6} parent=5 // pred_fallthru
      _
    %p136 = scmp.le.s32.totalorder 1, %s9
    %p137 = scmp.lt.s32.totalorder %s9, 3
    %p138 = pnand %p136, %p137
    %p139 = pneg %p138
    // Predicated region
    $region29: #{generator_forward.6} parent=5 // pred_check
      _
    $region30: #{generator_forward.6} parent=5 // pred_check_branch
      %141 = sbr.rel (%p138) target = $region32
    $region31: #{generator_forward.6} parent=5 // pred_region
      %s142 = ssub.s32 %s9, 1
      %p143 = scmp.lt.s32.totalorder %s14, 1
      %s144 = scalar_select %p143, %s14, 1
      %s145 = smul.addr %s144, 6
      %s146 = smul.addr %s145, 4
      %s147 = scalar_lea.vmem %s0, %s146
      %p148 = pneg %p35
      %p149 = pneg %p32
      %p150 = pneg %p56
      %p151 = pneg %p53
      %p152 = pneg %p77
      %p153 = pneg %p74
      %p154 = pneg %p103
      %p155 = pneg %p100
      %p156 = scmp.lt.s32.totalorder %s14, 1
      %s157 = scalar_select %p156, %s14, 1
      %s158 = smul.addr %s157, 10
      %s159 = smul.addr %s158, 4
      %s160 = scalar_lea.vmem %s3, %s159
      %p161 = scmp.lt.s32.totalorder %s14, 1
      %s162 = scalar_select %p161, %s14, 1
      %s163 = smul.addr %s162, 6
      %s164 = smul.addr %s163, 4
      %s165 = scalar_lea.vmem %s0, %s164
      %p166 = scmp.lt.s32.totalorder %s14, 1
      %s167 = scalar_select %p166, %s14, 1
      %s168 = smul.addr %s167, 10
      %s169 = smul.addr %s168, 4
      %s170 = scalar_lea.vmem %s3, %s169
      %v171 = vld [vmem:[%s2] sm:$0x3]
      loop: start=0, step=1, limit=5
      $region33: #{generator_forward.6} parent=31 // loop_pre_header
        _
      $region34: #{generator_forward.6} parent=31 // loop_header
        %s173 = sphi 0, %s177
        %p174 = scmp.ge.s32.totalorder %s173, 5
      $region35: #{generator_forward.6} parent=31 // loop_header_branch
        %176 = sbr.rel (%p174) target = $region39
      $region36: #{generator_forward.6} parent=31 // loop_body
        %s178 = smul.addr %s173, 4
        %s179 = scalar_lea.vmem %s165, %s178
        %v180 = vld [vmem:[%s179] sm:$0x7]
        %v181 = vld [vmem:[%s1] sm:$0xff]
        %v182 = vld [vmem:[%s1 + $0x8] sm:$0xff]
        %v183 = vld [vmem:[%s1 + $0x10] sm:$0xff]
        %v184 = vld [vmem:[%s1 + $0x18] sm:$0xff]
        %v185 = vld [vmem:[%s1 + $0x20] sm:$0xff]
        %v186 = vld [vmem:[%s1 + $0x28] sm:$0xff]
        %v187 = vld [vmem:[%s1 + $0x30] sm:$0xff]
        %v188 = vld [vmem:[%s1 + $0x38] sm:$0xff]
        %v189 = vld [vmem:[%s1 + $0x40] sm:$0xff]
        %v190 = vld [vmem:[%s1 + $0x48] sm:$0xff]
        %v191 = vld [vmem:[%s1 + $0x50] sm:$0xff]
        %v192 = vld [vmem:[%s1 + $0x58] sm:$0xff]
        %v193 = vld [vmem:[%s1 + $0x60] sm:$0xff]
        %v194 = vld [vmem:[%s1 + $0x68] sm:$0xff]
        %v195 = vld [vmem:[%s1 + $0x70] sm:$0xff]
        %v196 = vld [vmem:[%s1 + $0x78] sm:$0xff]
        %s197 = scalar_lea.vmem %s1, 128
        %v198 = vld [vmem:[%s197] sm:$0xff]
        %v199 = vld [vmem:[%s197 + $0x8] sm:$0xff]
        %v200 = vld [vmem:[%s197 + $0x10] sm:$0xff]
        %v201 = vld [vmem:[%s197 + $0x18] sm:$0xff]
        %v202 = vld [vmem:[%s197 + $0x20] sm:$0xff]
        %v203 = vld [vmem:[%s197 + $0x28] sm:$0xff]
        %v204 = vld [vmem:[%s197 + $0x30] sm:$0xff]
        %v205 = vld [vmem:[%s197 + $0x38] sm:$0xff]
        %v206 = vld [vmem:[%s197 + $0x40] sm:$0xff]
        %v207 = vld [vmem:[%s197 + $0x48] sm:$0xff]
        %v208 = vld [vmem:[%s197 + $0x50] sm:$0xff]
        %v209 = vld [vmem:[%s197 + $0x58] sm:$0xff]
        %v210 = vld [vmem:[%s197 + $0x60] sm:$0xff]
        %v211 = vld [vmem:[%s197 + $0x68] sm:$0xff]
        %v212 = vld [vmem:[%s197 + $0x70] sm:$0xff]
        %v213 = vld [vmem:[%s197 + $0x78] sm:$0xff]
        %v215 = vunpack.c.l.b16 %v180
        %v216 = vpack.c.b16 %v215, %v215
        %v218 = vshrl.u32 %v216, 16
        %v220 = vshll.u32 %v216, 16
        %v222 = vrot.slane %v220, 1
        %v223 = vor.u32 %v218, %v222
        %v241 = vunpack.c.l.b16 %v198
        %v242 = vunpack.c.h.b16 %v198
        %v243 = vunpack.c.l.b16 %v199
        %v244 = vunpack.c.h.b16 %v199
        %v245 = vunpack.c.l.b16 %v200
        %v246 = vunpack.c.h.b16 %v200
        %v247 = vunpack.c.l.b16 %v201
        %v248 = vunpack.c.h.b16 %v201
        %v249 = vunpack.c.l.b16 %v202
        %v250 = vunpack.c.h.b16 %v202
        %v251 = vunpack.c.l.b16 %v203
        %v252 = vunpack.c.h.b16 %v203
        %v253 = vunpack.c.l.b16 %v204
        %v254 = vunpack.c.h.b16 %v204
        %v255 = vunpack.c.l.b16 %v205
        %v256 = vunpack.c.h.b16 %v205
        %v257 = vunpack.c.l.b16 %v206
        %v258 = vunpack.c.h.b16 %v206
        %v259 = vunpack.c.l.b16 %v207
        %v260 = vunpack.c.h.b16 %v207
        %v261 = vunpack.c.l.b16 %v208
        %v262 = vunpack.c.h.b16 %v208
        %v263 = vunpack.c.l.b16 %v209
        %v264 = vunpack.c.h.b16 %v209
        %v265 = vunpack.c.l.b16 %v210
        %v266 = vunpack.c.h.b16 %v210
        %v267 = vunpack.c.l.b16 %v211
        %v268 = vunpack.c.h.b16 %v211
        %v269 = vunpack.c.l.b16 %v212
        %v270 = vunpack.c.h.b16 %v212
        %v271 = vunpack.c.l.b16 %v213
        %v272 = vunpack.c.h.b16 %v213
        %v273 = vpack.c.b16 %v243, %v241
        %v274 = vpack.c.b16 %v244, %v242
        %v275 = vpack.c.b16 %v247, %v245
        %v276 = vpack.c.b16 %v248, %v246
        %v277 = vpack.c.b16 %v251, %v249
        %v278 = vpack.c.b16 %v252, %v250
        %v279 = vpack.c.b16 %v255, %v253
        %v280 = vpack.c.b16 %v256, %v254
        %v281 = vpack.c.b16 %v259, %v257
        %v282 = vpack.c.b16 %v260, %v258
        %v283 = vpack.c.b16 %v263, %v261
        %v284 = vpack.c.b16 %v264, %v262
        %v285 = vpack.c.b16 %v267, %v265
        %v286 = vpack.c.b16 %v268, %v266
        %v287 = vpack.c.b16 %v271, %v269
        %v288 = vpack.c.b16 %v272, %v270
        %305 = vmatpush.bf16.msra.mxu0 %v287
        %306 = vmatpush.bf16.msra.mxu0 %v285
        %307 = vmatpush.bf16.msra.mxu0 %v283
        %308 = vmatpush.bf16.msra.mxu0 %v281
        %309 = vmatpush.bf16.msra.mxu0 %v279
        %310 = vmatpush.bf16.msra.mxu0 %v277
        %311 = vmatpush.bf16.msra.mxu0 %v275
        %312 = vmatpush.bf16.msra.mxu0 %v273
        %313 = vmatmul.bf16.gmra.mxu0 %v223
        %v314 = vpop.f32.mrf.mxu0
        %v315 = vadd.f32 0.0, %v314
        %v316 = vpop.f32.mrf.mxu0
        %317 = vdwg.mxu0
        %318 = vmatpush.bf16.msra.mxu0 %v288
        %319 = vmatpush.bf16.msra.mxu0 %v286
        %320 = vmatpush.bf16.msra.mxu0 %v284
        %321 = vmatpush.bf16.msra.mxu0 %v282
        %322 = vmatpush.bf16.msra.mxu0 %v280
        %323 = vmatpush.bf16.msra.mxu0 %v278
        %324 = vmatpush.bf16.msra.mxu0 %v276
        %325 = vmatpush.bf16.msra.mxu0 %v274
        %326 = vmatmul.bf16.gmra.mxu0 %v223
        %v327 = vpop.f32.mrf.mxu0
        %v328 = vadd.f32 0.0, %v327
        %v329 = vpop.f32.mrf.mxu0
        %330 = vdwg.mxu0
        %v347 = vunpack.c.l.b16 %v181
        %v348 = vunpack.c.h.b16 %v181
        %v349 = vunpack.c.l.b16 %v182
        %v350 = vunpack.c.h.b16 %v182
        %v351 = vunpack.c.l.b16 %v183
        %v352 = vunpack.c.h.b16 %v183
        %v353 = vunpack.c.l.b16 %v184
        %v354 = vunpack.c.h.b16 %v184
        %v355 = vunpack.c.l.b16 %v185
        %v356 = vunpack.c.h.b16 %v185
        %v357 = vunpack.c.l.b16 %v186
        %v358 = vunpack.c.h.b16 %v186
        %v359 = vunpack.c.l.b16 %v187
        %v360 = vunpack.c.h.b16 %v187
        %v361 = vunpack.c.l.b16 %v188
        %v362 = vunpack.c.h.b16 %v188
        %v363 = vunpack.c.l.b16 %v189
        %v364 = vunpack.c.h.b16 %v189
        %v365 = vunpack.c.l.b16 %v190
        %v366 = vunpack.c.h.b16 %v190
        %v367 = vunpack.c.l.b16 %v191
        %v368 = vunpack.c.h.b16 %v191
        %v369 = vunpack.c.l.b16 %v192
        %v370 = vunpack.c.h.b16 %v192
        %v371 = vunpack.c.l.b16 %v193
        %v372 = vunpack.c.h.b16 %v193
        %v373 = vunpack.c.l.b16 %v194
        %v374 = vunpack.c.h.b16 %v194
        %v375 = vunpack.c.l.b16 %v195
        %v376 = vunpack.c.h.b16 %v195
        %v377 = vunpack.c.l.b16 %v196
        %v378 = vunpack.c.h.b16 %v196
        %v379 = vpack.c.b16 %v349, %v347
        %v380 = vpack.c.b16 %v350, %v348
        %v381 = vpack.c.b16 %v353, %v351
        %v382 = vpack.c.b16 %v354, %v352
        %v383 = vpack.c.b16 %v357, %v355
        %v384 = vpack.c.b16 %v358, %v356
        %v385 = vpack.c.b16 %v361, %v359
        %v386 = vpack.c.b16 %v362, %v360
        %v387 = vpack.c.b16 %v365, %v363
        %v388 = vpack.c.b16 %v366, %v364
        %v389 = vpack.c.b16 %v369, %v367
        %v390 = vpack.c.b16 %v370, %v368
        %v391 = vpack.c.b16 %v373, %v371
        %v392 = vpack.c.b16 %v374, %v372
        %v393 = vpack.c.b16 %v377, %v375
        %v394 = vpack.c.b16 %v378, %v376
        %411 = vmatpush.bf16.msra.mxu0 %v393
        %412 = vmatpush.bf16.msra.mxu0 %v391
        %413 = vmatpush.bf16.msra.mxu0 %v389
        %414 = vmatpush.bf16.msra.mxu0 %v387
        %415 = vmatpush.bf16.msra.mxu0 %v385
        %416 = vmatpush.bf16.msra.mxu0 %v383
        %417 = vmatpush.bf16.msra.mxu0 %v381
        %418 = vmatpush.bf16.msra.mxu0 %v379
        %419 = vmatmul.bf16.gmra.mxu0 %v180
        %v420 = vpop.f32.mrf.mxu0
        %v421 = vadd.f32 %v315, %v420
        %v422 = vpop.f32.mrf.mxu0
        %423 = vdwg.mxu0
        %424 = vmatpush.bf16.msra.mxu0 %v394
        %425 = vmatpush.bf16.msra.mxu0 %v392
        %426 = vmatpush.bf16.msra.mxu0 %v390
        %427 = vmatpush.bf16.msra.mxu0 %v388
        %428 = vmatpush.bf16.msra.mxu0 %v386
        %429 = vmatpush.bf16.msra.mxu0 %v384
        %430 = vmatpush.bf16.msra.mxu0 %v382
        %431 = vmatpush.bf16.msra.mxu0 %v380
        %432 = vmatmul.bf16.gmra.mxu0 %v180
        %v433 = vpop.f32.mrf.mxu0
        %v434 = vadd.f32 %v328, %v433
        %v435 = vpop.f32.mrf.mxu0
        %436 = vdwg.mxu0
        %s437 = sadd.s32 %s173, 1
        %s438 = smul.addr %s437, 4
        %s439 = scalar_lea.vmem %s165, %s438
        %v440 = vld [vmem:[%s439] sm:$0x7]
        %s441 = scalar_lea.vmem %s1, 256
        %v442 = vld [vmem:[%s441] sm:$0xff]
        %v443 = vld [vmem:[%s441 + $0x8] sm:$0xff]
        %v444 = vld [vmem:[%s441 + $0x10] sm:$0xff]
        %v445 = vld [vmem:[%s441 + $0x18] sm:$0xff]
        %v446 = vld [vmem:[%s441 + $0x20] sm:$0xff]
        %v447 = vld [vmem:[%s441 + $0x28] sm:$0xff]
        %v448 = vld [vmem:[%s441 + $0x30] sm:$0xff]
        %v449 = vld [vmem:[%s441 + $0x38] sm:$0xff]
        %v450 = vld [vmem:[%s441 + $0x40] sm:$0xff]
        %v451 = vld [vmem:[%s441 + $0x48] sm:$0xff]
        %v452 = vld [vmem:[%s441 + $0x50] sm:$0xff]
        %v453 = vld [vmem:[%s441 + $0x58] sm:$0xff]
        %v454 = vld [vmem:[%s441 + $0x60] sm:$0xff]
        %v455 = vld [vmem:[%s441 + $0x68] sm:$0xff]
        %v456 = vld [vmem:[%s441 + $0x70] sm:$0xff]
        %v457 = vld [vmem:[%s441 + $0x78] sm:$0xff]
        %v474 = vunpack.c.l.b16 %v442
        %v475 = vunpack.c.h.b16 %v442
        %v476 = vunpack.c.l.b16 %v443
        %v477 = vunpack.c.h.b16 %v443
        %v478 = vunpack.c.l.b16 %v444
        %v479 = vunpack.c.h.b16 %v444
        %v480 = vunpack.c.l.b16 %v445
        %v481 = vunpack.c.h.b16 %v445
        %v482 = vunpack.c.l.b16 %v446
        %v483 = vunpack.c.h.b16 %v446
        %v484 = vunpack.c.l.b16 %v447
        %v485 = vunpack.c.h.b16 %v447
        %v486 = vunpack.c.l.b16 %v448
        %v487 = vunpack.c.h.b16 %v448
        %v488 = vunpack.c.l.b16 %v449
        %v489 = vunpack.c.h.b16 %v449
        %v490 = vunpack.c.l.b16 %v450
        %v491 = vunpack.c.h.b16 %v450
        %v492 = vunpack.c.l.b16 %v451
        %v493 = vunpack.c.h.b16 %v451
        %v494 = vunpack.c.l.b16 %v452
        %v495 = vunpack.c.h.b16 %v452
        %v496 = vunpack.c.l.b16 %v453
        %v497 = vunpack.c.h.b16 %v453
        %v498 = vunpack.c.l.b16 %v454
        %v499 = vunpack.c.h.b16 %v454
        %v500 = vunpack.c.l.b16 %v455
        %v501 = vunpack.c.h.b16 %v455
        %v502 = vunpack.c.l.b16 %v456
        %v503 = vunpack.c.h.b16 %v456
        %v504 = vunpack.c.l.b16 %v457
        %v505 = vunpack.c.h.b16 %v457
        %v506 = vpack.c.b16 %v476, %v474
        %v507 = vpack.c.b16 %v477, %v475
        %v508 = vpack.c.b16 %v480, %v478
        %v509 = vpack.c.b16 %v481, %v479
        %v510 = vpack.c.b16 %v484, %v482
        %v511 = vpack.c.b16 %v485, %v483
        %v512 = vpack.c.b16 %v488, %v486
        %v513 = vpack.c.b16 %v489, %v487
        %v514 = vpack.c.b16 %v492, %v490
        %v515 = vpack.c.b16 %v493, %v491
        %v516 = vpack.c.b16 %v496, %v494
        %v517 = vpack.c.b16 %v497, %v495
        %v518 = vpack.c.b16 %v500, %v498
        %v519 = vpack.c.b16 %v501, %v499
        %v520 = vpack.c.b16 %v504, %v502
        %v521 = vpack.c.b16 %v505, %v503
        %538 = vmatpush.bf16.msra.mxu0 %v520
        %539 = vmatpush.bf16.msra.mxu0 %v518
        %540 = vmatpush.bf16.msra.mxu0 %v516
        %541 = vmatpush.bf16.msra.mxu0 %v514
        %542 = vmatpush.bf16.msra.mxu0 %v512
        %543 = vmatpush.bf16.msra.mxu0 %v510
        %544 = vmatpush.bf16.msra.mxu0 %v508
        %545 = vmatpush.bf16.msra.mxu0 %v506
        %546 = vmatmul.bf16.gmra.mxu0 %v440
        %v547 = vpop.f32.mrf.mxu0
        %v548 = vadd.f32 0.0, %v547
        %v549 = vpop.f32.mrf.mxu0
        %550 = vdwg.mxu0
        %551 = vmatpush.bf16.msra.mxu0 %v521
        %552 = vmatpush.bf16.msra.mxu0 %v519
        %553 = vmatpush.bf16.msra.mxu0 %v517
        %554 = vmatpush.bf16.msra.mxu0 %v515
        %555 = vmatpush.bf16.msra.mxu0 %v513
        %556 = vmatpush.bf16.msra.mxu0 %v511
        %557 = vmatpush.bf16.msra.mxu0 %v509
        %558 = vmatpush.bf16.msra.mxu0 %v507
        %559 = vmatmul.bf16.gmra.mxu0 %v440
        %v560 = vpop.f32.mrf.mxu0
        %v561 = vadd.f32 0.0, %v560
        %v562 = vpop.f32.mrf.mxu0
        %563 = vdwg.mxu0
        %v564 = vadd.f32 %v421, %v548
        %v565 = vadd.f32 %v434, %v561
        %s566 = scalar_lea.vmem %s1, 384
        %v567 = vld [vmem:[%s566] sm:$0xff]
        %v568 = vld [vmem:[%s566 + $0x8] sm:$0xff]
        %v569 = vld [vmem:[%s566 + $0x10] sm:$0xff]
        %v570 = vld [vmem:[%s566 + $0x18] sm:$0xff]
        %v571 = vld [vmem:[%s566 + $0x20] sm:$0xff]
        %v572 = vld [vmem:[%s566 + $0x28] sm:$0xff]
        %v573 = vld [vmem:[%s566 + $0x30] sm:$0xff]
        %v574 = vld [vmem:[%s566 + $0x38] sm:$0xff]
        %v575 = vld [vmem:[%s566 + $0x40] sm:$0xff]
        %v576 = vld [vmem:[%s566 + $0x48] sm:$0xff]
        %v577 = vld [vmem:[%s566 + $0x50] sm:$0xff]
        %v578 = vld [vmem:[%s566 + $0x58] sm:$0xff]
        %v579 = vld [vmem:[%s566 + $0x60] sm:$0xff]
        %v580 = vld [vmem:[%s566 + $0x68] sm:$0xff]
        %v581 = vld [vmem:[%s566 + $0x70] sm:$0xff]
        %v582 = vld [vmem:[%s566 + $0x78] sm:$0xff]
        %v584 = vunpack.c.l.b16 %v440
        %v585 = vpack.c.b16 %v584, %v584
        %v587 = vshrl.u32 %v585, 16
        %v589 = vshll.u32 %v585, 16
        %v591 = vrot.slane %v589, 1
        %v592 = vor.u32 %v587, %v591
        %v610 = vunpack.c.l.b16 %v567
        %v611 = vunpack.c.h.b16 %v567
        %v612 = vunpack.c.l.b16 %v568
        %v613 = vunpack.c.h.b16 %v568
        %v614 = vunpack.c.l.b16 %v569
        %v615 = vunpack.c.h.b16 %v569
        %v616 = vunpack.c.l.b16 %v570
        %v617 = vunpack.c.h.b16 %v570
        %v618 = vunpack.c.l.b16 %v571
        %v619 = vunpack.c.h.b16 %v571
        %v620 = vunpack.c.l.b16 %v572
        %v621 = vunpack.c.h.b16 %v572
        %v622 = vunpack.c.l.b16 %v573
        %v623 = vunpack.c.h.b16 %v573
        %v624 = vunpack.c.l.b16 %v574
        %v625 = vunpack.c.h.b16 %v574
        %v626 = vunpack.c.l.b16 %v575
        %v627 = vunpack.c.h.b16 %v575
        %v628 = vunpack.c.l.b16 %v576
        %v629 = vunpack.c.h.b16 %v576
        %v630 = vunpack.c.l.b16 %v577
        %v631 = vunpack.c.h.b16 %v577
        %v632 = vunpack.c.l.b16 %v578
        %v633 = vunpack.c.h.b16 %v578
        %v634 = vunpack.c.l.b16 %v579
        %v635 = vunpack.c.h.b16 %v579
        %v636 = vunpack.c.l.b16 %v580
        %v637 = vunpack.c.h.b16 %v580
        %v638 = vunpack.c.l.b16 %v581
        %v639 = vunpack.c.h.b16 %v581
        %v640 = vunpack.c.l.b16 %v582
        %v641 = vunpack.c.h.b16 %v582
        %v642 = vpack.c.b16 %v612, %v610
        %v643 = vpack.c.b16 %v613, %v611
        %v644 = vpack.c.b16 %v616, %v614
        %v645 = vpack.c.b16 %v617, %v615
        %v646 = vpack.c.b16 %v620, %v618
        %v647 = vpack.c.b16 %v621, %v619
        %v648 = vpack.c.b16 %v624, %v622
        %v649 = vpack.c.b16 %v625, %v623
        %v650 = vpack.c.b16 %v628, %v626
        %v651 = vpack.c.b16 %v629, %v627
        %v652 = vpack.c.b16 %v632, %v630
        %v653 = vpack.c.b16 %v633, %v631
        %v654 = vpack.c.b16 %v636, %v634
        %v655 = vpack.c.b16 %v637, %v635
        %v656 = vpack.c.b16 %v640, %v638
        %v657 = vpack.c.b16 %v641, %v639
        %674 = vmatpush.bf16.msra.mxu0 %v656
        %675 = vmatpush.bf16.msra.mxu0 %v654
        %676 = vmatpush.bf16.msra.mxu0 %v652
        %677 = vmatpush.bf16.msra.mxu0 %v650
        %678 = vmatpush.bf16.msra.mxu0 %v648
        %679 = vmatpush.bf16.msra.mxu0 %v646
        %680 = vmatpush.bf16.msra.mxu0 %v644
        %681 = vmatpush.bf16.msra.mxu0 %v642
        %682 = vmatmul.bf16.gmra.mxu0 %v592
        %v683 = vpop.f32.mrf.mxu0
        %v684 = vadd.f32 0.0, %v683
        %v685 = vpop.f32.mrf.mxu0
        %686 = vdwg.mxu0
        %687 = vmatpush.bf16.msra.mxu0 %v657
        %688 = vmatpush.bf16.msra.mxu0 %v655
        %689 = vmatpush.bf16.msra.mxu0 %v653
        %690 = vmatpush.bf16.msra.mxu0 %v651
        %691 = vmatpush.bf16.msra.mxu0 %v649
        %692 = vmatpush.bf16.msra.mxu0 %v647
        %693 = vmatpush.bf16.msra.mxu0 %v645
        %694 = vmatpush.bf16.msra.mxu0 %v643
        %695 = vmatmul.bf16.gmra.mxu0 %v592
        %v696 = vpop.f32.mrf.mxu0
        %v697 = vadd.f32 0.0, %v696
        %v698 = vpop.f32.mrf.mxu0
        %699 = vdwg.mxu0
        %v700 = vadd.f32 %v564, %v684
        %v701 = vadd.f32 %v565, %v697
        %v703 = vperm.slane %v171, 0
        %v704 = vperm.slane %v171, 1
        %v707 = vadd.f32 %v700, %v703
        %v708 = vadd.f32 %v701, %v704
        %v709 = vmax.f32 %v707, 0.0
        %v710 = vmax.f32 %v708, 0.0
        %v711 = vpack.c.bf16 %v710, %v709
        %s712 = smul.u32 %s173, 2
        %s713 = smul.addr %s712, 4
        %s714 = scalar_lea.vmem %s170, %s713
        %vm715 = vcmask 1042432
        %vm716 = vsmask.f32 2304
        %vm717 = vmand %vm715, %vm716
        %vm718 = vcmask 1046532
        %vm719 = vsmask.f32 6400
        %vm720 = vmand %vm718, %vm719
        %vm721 = vmor %vm720, %vm717
        %v722 = vld [vmem:[%s714] sm:$0x77]
        %v723 = vsel %vm721, %v711, %v722
        %724 = vst [vmem:[%s714] sm:$0x77] %v723
      $region37: #{generator_forward.6} parent=31 // loop_footer
        %s177 = sadd.s32 1, %s173
      $region38: #{generator_forward.6} parent=31 // loop_footer_branch
        %172 = sbr.rel target = $region34
      $region39: #{generator_forward.6} parent=31 // loop_exit
        _
      %p725 = scmp.lt.s32.totalorder %s14, 1
      %s726 = scalar_select %p725, %s14, 1
      %s727 = smul.addr %s726, 10
      %s728 = smul.addr %s727, 4
      %s729 = scalar_lea.vmem %s3, %s728
      // Predicated region
      $region40: #{generator_forward.6} parent=31 // pred_check
        %p730 = pneg %p100
      $region41: #{generator_forward.6} parent=31 // pred_check_branch
        %732 = sbr.rel (%p730) target = $region43
      $region42: #{generator_forward.6} parent=31 // pred_region
        _
      $region43: #{generator_forward.6} parent=31 // pred_fallthru
        _
    $region32: #{generator_forward.6} parent=5 // pred_fallthru
      _
    %p733 = scmp.le.s32.totalorder 2, %s9
    // Predicated region
    $region44: #{generator_forward.6} parent=5 // pred_check
      %p734 = pneg %p733
    $region45: #{generator_forward.6} parent=5 // pred_check_branch
      %736 = sbr.rel (%p734) target = $region47
    $region46: #{generator_forward.6} parent=5 // pred_region
      %s737 = ssub.s32 %s9, 2
      // Predicated region
      $region48: #{generator_forward.6} parent=46 // pred_check
        %p738 = pneg %p106
      $region49: #{generator_forward.6} parent=46 // pred_check_branch
        %740 = sbr.rel (%p738) target = $region51
      $region50: #{generator_forward.6} parent=46 // pred_region
        %p741 = scmp.lt.s32.totalorder %s15, 1
        %s742 = scalar_select %p741, %s15, 1
        %s743 = smul.addr %s742, 10
        %s744 = smul.addr %s743, 4
        %s745 = scalar_lea.vmem %s3, %s744
      $region51: #{generator_forward.6} parent=46 // pred_fallthru
        _
    $region47: #{generator_forward.6} parent=5 // pred_fallthru
      _
  $region6: #{generator_forward.6} parent=0 // loop_footer
    %s13 = sadd.s32 1, %s9
  $region7: #{generator_forward.6} parent=0 // loop_footer_branch
    %8 = sbr.rel target = $region3
  $region8: #{generator_forward.6} parent=0 // loop_exit
    _

// kernel: tile.18
$region0: #{tile.18}
  #allocation0 [shape = 's32[1]{0}', space=sflag, size = 0x4, scoped, tag = 'scoped memory for tile.18']
  %s0 = inlined_call_operand.vmem [shape: f32[3], index: 0, kind: input, shape index: {}]
  %s1 = inlined_call_operand.vmem [shape: f32[4,3], index: 1, kind: output, shape index: {}]
  // Predicated region
  $region2: #{tile.18} parent=0 // pred_check
    _
  $region3: #{tile.18} parent=0 // pred_check_branch
    %3 = sbr.rel (0) target = $region5
  $region4: #{tile.18} parent=0 // pred_region
    _
  $region5: #{tile.18} parent=0 // pred_fallthru
    _
  %v4 = vld [vmem:[%s0] ss:$0 sm:$0xff]
  %5 = vst [vmem:[%s1] sm:$0xf] %v4

// kernel: tile.19
$region0: #{tile.19}
  %s0 = inlined_call_operand.vmem [shape: f32[4,3], index: 0, kind: input, shape index: {}]
  %s1 = inlined_call_operand.vmem [shape: f32[1,12], index: 1, kind: output, shape index: {}]
  $region1: #{tile.19} parent=0
    #allocation0 [shape = 'u8[4096]{0}', space=vmem, size = 0x1000, scoped, tag = 'scoped mem for output reshape']
    #allocation1 [shape = 'u8[4096]{0}', space=vmem, size = 0x1000, scoped, tag = 'scoped mem for input reshape']
    %s3 = ssub.s32 16, 1
    %v4 = vld [vmem:[%s0] sm:%s3]
    %5 = vst [vmem:[#allocation1] sm:%s3] %v4
    %v6 = vld [vmem:[#allocation1] sm:$0x1]
    %vm7 = vcmask 23552
    %8 = vst.msk [vmem:[#allocation0] sm:$0x1] %vm7, %v6
    %s9 = scalar_lea.vmem [#allocation1], 3
    %v10 = vld [vmem:[%s9] sm:$0x1]
    %11 = vrot.lane.b32.xlu0 %v10, 9
    %v12 = vpop.permute.xlu0 %11
    %vm13 = vcmask 97352
    %14 = vst.msk [vmem:[#allocation0] sm:$0x1] %vm13, %v12
    %s15 = scalar_lea.vmem [#allocation1], 2
    %v16 = vld [vmem:[%s15] sm:$0x1]
    %17 = vrot.lane.b32.xlu0 %v16, 6
    %v18 = vpop.permute.xlu0 %17
    %vm19 = vcmask 72752
    %20 = vst.msk [vmem:[#allocation0] sm:$0x1] %vm19, %v18
    %s21 = scalar_lea.vmem [#allocation1], 1
    %v22 = vld [vmem:[%s21] sm:$0x1]
    %23 = vrot.lane.b32.xlu0 %v22, 3
    %v24 = vpop.permute.xlu0 %23
    %vm25 = vcmask 48152
    %26 = vst.msk [vmem:[#allocation0] sm:$0x1] %vm25, %v24
    %s28 = ssub.s32 2, 1
    %v29 = vld [vmem:[#allocation0] sm:%s28]
    %s31 = ssub.s32 2, 1
    %32 = vst [vmem:[%s1] sm:%s31] %v29

// kernel: generator_forward.7
$region0: #{generator_forward.7}
  #allocation0 [shape = 'u32[]', space=smem, size = 0x4, offset = 0x4, fixed_abs, tag = 'smem constant byte address 0x4 - core index']
  #allocation1 [shape = 'u32[72,128]{1,0:T(1,128)}', space=vmem, size = 0x9000, scoped, tag = 'internal scratch']
  %s0 = inlined_call_operand.vmem [shape: bf16[2,10,10,64], index: 0, kind: input, shape index: {}]
  %s1 = inlined_call_operand.vmem [shape: bf16[4,64,12], index: 1, kind: input, shape index: {}]
  %s2 = inlined_call_operand.vmem [shape: f32[1,12], index: 2, kind: input, shape index: {}]
  %s3 = inlined_call_operand.vmem [shape: f32[2,9,9,12], index: 3, kind: output, shape index: {}]
  %s4 = sld [smem:[#allocation0]]
  $region52: #{generator_forward.7} parent=0
    _
  %s6 = ssub.s32 1, %s4
  %s7 = scalar_select 0, %s6, %s4
  loop: start=0, step=1, limit=4
  $region2: #{generator_forward.7} parent=0 // loop_pre_header
    _
  $region3: #{generator_forward.7} parent=0 // loop_header
    %s9 = sphi 0, %s13
    %p10 = scmp.ge.s32.totalorder %s9, 4
    %s19 = sphi 0, %s21
    %s22 = sphi 0, %s19
    %s23 = sphi 0, %s22
    %s39 = sphi 0, %s23
    %s43 = sphi 0, %s43
    %s45 = sphi 0, %s43
    %s46 = sphi 0, %s45
    %s60 = sphi 0, %s46
    %s64 = sphi 0, %s64
    %s66 = sphi 0, %s64
    %s67 = sphi 0, %s66
    %s81 = sphi 0, %s67
    %s87 = sphi 0, %s89
    %s90 = sphi 0, %s87
    %s91 = sphi 0, %s90
    %s107 = sphi 0, %s91
  $region4: #{generator_forward.7} parent=0 // loop_header_branch
    %12 = sbr.rel (%p10) target = $region8
  $region5: #{generator_forward.7} parent=0 // loop_body
    %s14 = ssub.s32 %s9, 1
    %s15 = ssub.s32 %s9, 2
    %s16 = sadd.s32 %s9, 1
    %s17 = ssub.s32 %s9, %s16
    %p18 = scmp.eq.s32.totalorder %s17, 0
    %s20 = sadd.s32 %s19, 1
    %s21 = scalar_select %p18, %s19, %s20
    %p24 = pneg %p18
    %p25 = scmp.eq.s32.totalorder %s9, 1
    %p26 = por %p24, %p25
    %p27 = scmp.ne.s32.totalorder %s19, %s22
    %p28 = scmp.eq.s32.totalorder %s9, 0
    %p29 = por %p27, %p28
    %p30 = scmp.ne.s32.totalorder %s19, %s22
    %p31 = scmp.eq.s32.totalorder %s14, 1
    %p32 = por %p30, %p31
    %p33 = scmp.ne.s32.totalorder %s22, %s23
    %p34 = scmp.eq.s32.totalorder %s14, 0
    %p35 = por %p33, %p34
    %p36 = scmp.ne.s32.totalorder %s22, %s23
    %p37 = scmp.eq.s32.totalorder %s15, 1
    %p38 = por %p36, %p37
    %p40 = scmp.ne.s32.totalorder %s23, %s39
    %p41 = scmp.eq.s32.totalorder %s15, 0
    %p42 = por %p40, %p41
    %s44 = sadd.s32 %s43, 1
    %p47 = scmp.eq.s32.totalorder %s9, 1
    %p48 = scmp.ne.s32.totalorder %s43, %s45
    %p49 = scmp.eq.s32.totalorder %s9, 0
    %p50 = por %p48, %p49
    %p51 = scmp.ne.s32.totalorder %s43, %s45
    %p52 = scmp.eq.s32.totalorder %s14, 1
    %p53 = por %p51, %p52
    %p54 = scmp.ne.s32.totalorder %s45, %s46
    %p55 = scmp.eq.s32.totalorder %s14, 0
    %p56 = por %p54, %p55
    %p57 = scmp.ne.s32.totalorder %s45, %s46
    %p58 = scmp.eq.s32.totalorder %s15, 1
    %p59 = por %p57, %p58
    %p61 = scmp.ne.s32.totalorder %s46, %s60
    %p62 = scmp.eq.s32.totalorder %s15, 0
    %p63 = por %p61, %p62
    %s65 = sadd.s32 %s64, 1
    %p68 = scmp.eq.s32.totalorder %s9, 1
    %p69 = scmp.ne.s32.totalorder %s64, %s66
    %p70 = scmp.eq.s32.totalorder %s9, 0
    %p71 = por %p69, %p70
    %p72 = scmp.ne.s32.totalorder %s64, %s66
    %p73 = scmp.eq.s32.totalorder %s14, 1
    %p74 = por %p72, %p73
    %p75 = scmp.ne.s32.totalorder %s66, %s67
    %p76 = scmp.eq.s32.totalorder %s14, 0
    %p77 = por %p75, %p76
    %p78 = scmp.ne.s32.totalorder %s66, %s67
    %p79 = scmp.eq.s32.totalorder %s15, 1
    %p80 = por %p78, %p79
    %p82 = scmp.ne.s32.totalorder %s67, %s81
    %p83 = scmp.eq.s32.totalorder %s15, 0
    %p84 = por %p82, %p83
    %s85 = ssub.s32 %s9, %s16
    %p86 = scmp.eq.s32.totalorder %s85, 0
    %s88 = sadd.s32 %s87, 1
    %s89 = scalar_select %p86, %s87, %s88
    %p92 = pneg %p86
    %p93 = scmp.eq.s32.totalorder %s9, 1
    %p94 = por %p92, %p93
    %p95 = scmp.ne.s32.totalorder %s87, %s90
    %p96 = scmp.eq.s32.totalorder %s9, 0
    %p97 = por %p95, %p96
    %p98 = scmp.ne.s32.totalorder %s87, %s90
    %p99 = scmp.eq.s32.totalorder %s14, 1
    %p100 = por %p98, %p99
    %p101 = scmp.ne.s32.totalorder %s90, %s91
    %p102 = scmp.eq.s32.totalorder %s14, 0
    %p103 = por %p101, %p102
    %p104 = scmp.ne.s32.totalorder %s90, %s91
    %p105 = scmp.eq.s32.totalorder %s15, 1
    %p106 = por %p104, %p105
    %p108 = scmp.ne.s32.totalorder %s91, %s107
    %p109 = scmp.eq.s32.totalorder %s15, 0
    %p110 = por %p108, %p109
    %p111 = scmp.le.s32.totalorder 1, %s9
    %p112 = scmp.lt.s32.totalorder %s9, 3
    %p113 = pnand %p111, %p112
    %p114 = pneg %p113
    // Predicated region
    $region9: #{generator_forward.7} parent=5 // pred_check
      _
    $region10: #{generator_forward.7} parent=5 // pred_check_branch
      %116 = sbr.rel (%p113) target = $region12
    $region11: #{generator_forward.7} parent=5 // pred_region
      %s117 = ssub.s32 %s9, 1
      // Predicated region
      $region13: #{generator_forward.7} parent=11 // pred_check
        %p118 = pneg %p56
      $region14: #{generator_forward.7} parent=11 // pred_check_branch
        %120 = sbr.rel (%p118) target = $region16
      $region15: #{generator_forward.7} parent=11 // pred_region
        _
      $region16: #{generator_forward.7} parent=11 // pred_fallthru
        _
      // Predicated region
      $region17: #{generator_forward.7} parent=11 // pred_check
        %p121 = pneg %p77
      $region18: #{generator_forward.7} parent=11 // pred_check_branch
        %123 = sbr.rel (%p121) target = $region20
      $region19: #{generator_forward.7} parent=11 // pred_region
        _
      $region20: #{generator_forward.7} parent=11 // pred_fallthru
        _
    $region12: #{generator_forward.7} parent=5 // pred_fallthru
      _
    %p124 = scmp.lt.s32.totalorder %s9, 2
    // Predicated region
    $region21: #{generator_forward.7} parent=5 // pred_check
      %p125 = pneg %p124
    $region22: #{generator_forward.7} parent=5 // pred_check_branch
      %127 = sbr.rel (%p125) target = $region24
    $region23: #{generator_forward.7} parent=5 // pred_region
      // Predicated region
      $region25: #{generator_forward.7} parent=23 // pred_check
        %p128 = pneg %p29
      $region26: #{generator_forward.7} parent=23 // pred_check_branch
        %130 = sbr.rel (%p128) target = $region28
      $region27: #{generator_forward.7} parent=23 // pred_region
        %p131 = scmp.lt.s32.totalorder %s9, 1
        %s132 = scalar_select %p131, %s9, 1
        %s133 = smul.addr %s132, 20
        %s134 = smul.addr %s133, 4
        %s135 = scalar_lea.vmem %s0, %s134
      $region28: #{generator_forward.7} parent=23 // pred_fallthru
        _
    $region24: #{generator_forward.7} parent=5 // pred_fallthru
      _
    %p136 = scmp.le.s32.totalorder 1, %s9
    %p137 = scmp.lt.s32.totalorder %s9, 3
    %p138 = pnand %p136, %p137
    %p139 = pneg %p138
    // Predicated region
    $region29: #{generator_forward.7} parent=5 // pred_check
      _
    $region30: #{generator_forward.7} parent=5 // pred_check_branch
      %141 = sbr.rel (%p138) target = $region32
    $region31: #{generator_forward.7} parent=5 // pred_region
      %s142 = ssub.s32 %s9, 1
      %p143 = scmp.lt.s32.totalorder %s14, 1
      %s144 = scalar_select %p143, %s14, 1
      %s145 = smul.addr %s144, 20
      %s146 = smul.addr %s145, 4
      %s147 = scalar_lea.vmem %s0, %s146
      %p148 = pneg %p35
      %p149 = pneg %p32
      %p150 = pneg %p56
      %p151 = pneg %p53
      %p152 = pneg %p77
      %p153 = pneg %p74
      %p154 = pneg %p103
      %p155 = pneg %p100
      %p156 = scmp.lt.s32.totalorder %s14, 1
      %s157 = scalar_select %p156, %s14, 1
      %s158 = smul.addr %s157, 18
      %s159 = smul.addr %s158, 8
      %s160 = scalar_lea.vmem %s3, %s159
      %p161 = scmp.lt.s32.totalorder %s14, 1
      %s162 = scalar_select %p161, %s14, 1
      %s163 = smul.addr %s162, 20
      %s164 = smul.addr %s163, 4
      %s165 = scalar_lea.vmem %s0, %s164
      %p166 = scmp.lt.s32.totalorder %s14, 1
      %s167 = scalar_select %p166, %s14, 1
      %s168 = smul.addr %s167, 18
      %s169 = smul.addr %s168, 8
      %s170 = scalar_lea.vmem %s3, %s169
      %v172 = vld [vmem:[%s2] sm:$0x1]
      loop: start=0, step=1, limit=9
      $region33: #{generator_forward.7} parent=31 // loop_pre_header
        _
      $region34: #{generator_forward.7} parent=31 // loop_header
        %s174 = sphi 0, %s178
        %p175 = scmp.ge.s32.totalorder %s174, 9
      $region35: #{generator_forward.7} parent=31 // loop_header_branch
        %177 = sbr.rel (%p175) target = $region39
      $region36: #{generator_forward.7} parent=31 // loop_body
        %s179 = smul.u32 %s174, 2
        %s180 = smul.addr %s179, 4
        %s181 = scalar_lea.vmem %s165, %s180
        %v182 = vld [vmem:[%s181] sm:$0xf]
        %v183 = vld [vmem:[%s181 + $0x4] sm:$0x1]
        %v184 = vld [vmem:[%s1] sm:$0xf]
        %v185 = vld [vmem:[%s1 + $0x4] sm:$0xf]
        %v186 = vld [vmem:[%s1 + $0x8] sm:$0xf]
        %v187 = vld [vmem:[%s1 + $0xc] sm:$0xf]
        %v188 = vld [vmem:[%s1 + $0x10] sm:$0xf]
        %v189 = vld [vmem:[%s1 + $0x14] sm:$0xf]
        %v190 = vld [vmem:[%s1 + $0x18] sm:$0xf]
        %v191 = vld [vmem:[%s1 + $0x1c] sm:$0xf]
        %s192 = scalar_lea.vmem %s1, 32
        %v193 = vld [vmem:[%s192] sm:$0xf]
        %v194 = vld [vmem:[%s192 + $0x4] sm:$0xf]
        %v195 = vld [vmem:[%s192 + $0x8] sm:$0xf]
        %v196 = vld [vmem:[%s192 + $0xc] sm:$0xf]
        %v197 = vld [vmem:[%s192 + $0x10] sm:$0xf]
        %v198 = vld [vmem:[%s192 + $0x14] sm:$0xf]
        %v199 = vld [vmem:[%s192 + $0x18] sm:$0xf]
        %v200 = vld [vmem:[%s192 + $0x1c] sm:$0xf]
        %v203 = vunpack.c.l.b16 %v182
        %v204 = vunpack.c.l.b16 %v183
        %v205 = vpack.c.b16 %v204, %v203
        %v207 = vshrl.u32 %v205, 16
        %v209 = vshll.u32 %v205, 16
        %v211 = vrot.slane %v209, 1
        %v212 = vor.u32 %v207, %v211
        %v221 = vunpack.c.l.b16 %v193
        %v222 = vunpack.c.l.b16 %v194
        %v223 = vunpack.c.l.b16 %v195
        %v224 = vunpack.c.l.b16 %v196
        %v225 = vunpack.c.l.b16 %v197
        %v226 = vunpack.c.l.b16 %v198
        %v227 = vunpack.c.l.b16 %v199
        %v228 = vunpack.c.l.b16 %v200
        %v229 = vpack.c.b16 %v222, %v221
        %v230 = vpack.c.b16 %v224, %v223
        %v231 = vpack.c.b16 %v226, %v225
        %v232 = vpack.c.b16 %v228, %v227
        %vm237 = vcmask 523264
        %v239 = vsel %vm237, %v212, 0
        %241 = vmatpush.bf16.msra.mxu0 0
        %242 = vmatpush.bf16.msra.mxu0 0
        %243 = vmatpush.bf16.msra.mxu0 0
        %244 = vmatpush.bf16.msra.mxu0 0
        %245 = vmatpush.bf16.msra.mxu0 %v232
        %246 = vmatpush.bf16.msra.mxu0 %v231
        %247 = vmatpush.bf16.msra.mxu0 %v230
        %248 = vmatpush.bf16.msra.mxu0 %v229
        %249 = vmatmul.bf16.gmra.mxu0 %v239
        %v250 = vpop.f32.mrf.mxu0
        %v251 = vadd.f32 0.0, %v250
        %v252 = vpop.f32.mrf.mxu0
        %v253 = vadd.f32 0.0, %v252
        %254 = vdwg.mxu0
        %v263 = vunpack.c.l.b16 %v184
        %v264 = vunpack.c.l.b16 %v185
        %v265 = vunpack.c.l.b16 %v186
        %v266 = vunpack.c.l.b16 %v187
        %v267 = vunpack.c.l.b16 %v188
        %v268 = vunpack.c.l.b16 %v189
        %v269 = vunpack.c.l.b16 %v190
        %v270 = vunpack.c.l.b16 %v191
        %v271 = vpack.c.b16 %v264, %v263
        %v272 = vpack.c.b16 %v266, %v265
        %v273 = vpack.c.b16 %v268, %v267
        %v274 = vpack.c.b16 %v270, %v269
        %v279 = vsel %vm237, %v205, 0
        %281 = vmatpush.bf16.msra.mxu0 0
        %282 = vmatpush.bf16.msra.mxu0 0
        %283 = vmatpush.bf16.msra.mxu0 0
        %284 = vmatpush.bf16.msra.mxu0 0
        %285 = vmatpush.bf16.msra.mxu0 %v274
        %286 = vmatpush.bf16.msra.mxu0 %v273
        %287 = vmatpush.bf16.msra.mxu0 %v272
        %288 = vmatpush.bf16.msra.mxu0 %v271
        %289 = vmatmul.bf16.gmra.mxu0 %v279
        %v290 = vpop.f32.mrf.mxu0
        %v291 = vadd.f32 %v251, %v290
        %v292 = vpop.f32.mrf.mxu0
        %v293 = vadd.f32 %v253, %v292
        %294 = vdwg.mxu0
        %s295 = sadd.s32 %s174, 1
        %s296 = smul.u32 %s295, 2
        %s297 = smul.addr %s296, 4
        %s298 = scalar_lea.vmem %s165, %s297
        %v299 = vld [vmem:[%s298] sm:$0xf]
        %v300 = vld [vmem:[%s298 + $0x4] sm:$0x1]
        %s301 = scalar_lea.vmem %s1, 64
        %v302 = vld [vmem:[%s301] sm:$0xf]
        %v303 = vld [vmem:[%s301 + $0x4] sm:$0xf]
        %v304 = vld [vmem:[%s301 + $0x8] sm:$0xf]
        %v305 = vld [vmem:[%s301 + $0xc] sm:$0xf]
        %v306 = vld [vmem:[%s301 + $0x10] sm:$0xf]
        %v307 = vld [vmem:[%s301 + $0x14] sm:$0xf]
        %v308 = vld [vmem:[%s301 + $0x18] sm:$0xf]
        %v309 = vld [vmem:[%s301 + $0x1c] sm:$0xf]
        %v312 = vunpack.c.l.b16 %v299
        %v313 = vunpack.c.l.b16 %v300
        %v314 = vpack.c.b16 %v313, %v312
        %v323 = vunpack.c.l.b16 %v302
        %v324 = vunpack.c.l.b16 %v303
        %v325 = vunpack.c.l.b16 %v304
        %v326 = vunpack.c.l.b16 %v305
        %v327 = vunpack.c.l.b16 %v306
        %v328 = vunpack.c.l.b16 %v307
        %v329 = vunpack.c.l.b16 %v308
        %v330 = vunpack.c.l.b16 %v309
        %v331 = vpack.c.b16 %v324, %v323
        %v332 = vpack.c.b16 %v326, %v325
        %v333 = vpack.c.b16 %v328, %v327
        %v334 = vpack.c.b16 %v330, %v329
        %v340 = vsel %vm237, %v314, 0
        %342 = vmatpush.bf16.msra.mxu0 0
        %343 = vmatpush.bf16.msra.mxu0 0
        %344 = vmatpush.bf16.msra.mxu0 0
        %345 = vmatpush.bf16.msra.mxu0 0
        %346 = vmatpush.bf16.msra.mxu0 %v334
        %347 = vmatpush.bf16.msra.mxu0 %v333
        %348 = vmatpush.bf16.msra.mxu0 %v332
        %349 = vmatpush.bf16.msra.mxu0 %v331
        %350 = vmatmul.bf16.gmra.mxu0 %v340
        %v351 = vpop.f32.mrf.mxu0
        %v352 = vadd.f32 0.0, %v351
        %v353 = vpop.f32.mrf.mxu0
        %v354 = vadd.f32 0.0, %v353
        %355 = vdwg.mxu0
        %v356 = vadd.f32 %v291, %v352
        %v357 = vadd.f32 %v293, %v354
        %s358 = scalar_lea.vmem %s1, 96
        %v359 = vld [vmem:[%s358] sm:$0xf]
        %v360 = vld [vmem:[%s358 + $0x4] sm:$0xf]
        %v361 = vld [vmem:[%s358 + $0x8] sm:$0xf]
        %v362 = vld [vmem:[%s358 + $0xc] sm:$0xf]
        %v363 = vld [vmem:[%s358 + $0x10] sm:$0xf]
        %v364 = vld [vmem:[%s358 + $0x14] sm:$0xf]
        %v365 = vld [vmem:[%s358 + $0x18] sm:$0xf]
        %v366 = vld [vmem:[%s358 + $0x1c] sm:$0xf]
        %v367 = vshrl.u32 %v314, 16
        %v369 = vshll.u32 %v314, 16
        %v371 = vrot.slane %v369, 1
        %v372 = vor.u32 %v367, %v371
        %v381 = vunpack.c.l.b16 %v359
        %v382 = vunpack.c.l.b16 %v360
        %v383 = vunpack.c.l.b16 %v361
        %v384 = vunpack.c.l.b16 %v362
        %v385 = vunpack.c.l.b16 %v363
        %v386 = vunpack.c.l.b16 %v364
        %v387 = vunpack.c.l.b16 %v365
        %v388 = vunpack.c.l.b16 %v366
        %v389 = vpack.c.b16 %v382, %v381
        %v390 = vpack.c.b16 %v384, %v383
        %v391 = vpack.c.b16 %v386, %v385
        %v392 = vpack.c.b16 %v388, %v387
        %v398 = vsel %vm237, %v372, 0
        %400 = vmatpush.bf16.msra.mxu0 0
        %401 = vmatpush.bf16.msra.mxu0 0
        %402 = vmatpush.bf16.msra.mxu0 0
        %403 = vmatpush.bf16.msra.mxu0 0
        %404 = vmatpush.bf16.msra.mxu0 %v392
        %405 = vmatpush.bf16.msra.mxu0 %v391
        %406 = vmatpush.bf16.msra.mxu0 %v390
        %407 = vmatpush.bf16.msra.mxu0 %v389
        %408 = vmatmul.bf16.gmra.mxu0 %v398
        %v409 = vpop.f32.mrf.mxu0
        %v410 = vadd.f32 0.0, %v409
        %v411 = vpop.f32.mrf.mxu0
        %v412 = vadd.f32 0.0, %v411
        %413 = vdwg.mxu0
        %v414 = vadd.f32 %v356, %v410
        %v415 = vadd.f32 %v357, %v412
        %v417 = vperm.slane %v172, 0
        %v419 = vadd.f32 %v414, %v417
        %v420 = vadd.f32 %v415, %v417
        %v421 = vtanh.pop %v419
        %v422 = vtanh.pop %v420
        %s423 = smul.u32 %s174, 16
        %s424 = scalar_lea.vmem %s170, %s423
        %vm425 = vcmask 97280
        %426 = vst.msk [vmem:[%s424] sm:$0xff] %vm425, %v421
        %vm427 = vcmask 90112
        %428 = vst.msk [vmem:[%s424 + $0x8] sm:$0x1] %vm427, %v422
      $region37: #{generator_forward.7} parent=31 // loop_footer
        %s178 = sadd.s32 1, %s174
      $region38: #{generator_forward.7} parent=31 // loop_footer_branch
        %173 = sbr.rel target = $region34
      $region39: #{generator_forward.7} parent=31 // loop_exit
        _
      %p429 = scmp.lt.s32.totalorder %s14, 1
      %s430 = scalar_select %p429, %s14, 1
      %s431 = smul.addr %s430, 18
      %s432 = smul.addr %s431, 8
      %s433 = scalar_lea.vmem %s3, %s432
      // Predicated region
      $region40: #{generator_forward.7} parent=31 // pred_check
        %p434 = pneg %p100
      $region41: #{generator_forward.7} parent=31 // pred_check_branch
        %436 = sbr.rel (%p434) target = $region43
      $region42: #{generator_forward.7} parent=31 // pred_region
        _
      $region43: #{generator_forward.7} parent=31 // pred_fallthru
        _
    $region32: #{generator_forward.7} parent=5 // pred_fallthru
      _
    %p437 = scmp.le.s32.totalorder 2, %s9
    // Predicated region
    $region44: #{generator_forward.7} parent=5 // pred_check
      %p438 = pneg %p437
    $region45: #{generator_forward.7} parent=5 // pred_check_branch
      %440 = sbr.rel (%p438) target = $region47
    $region46: #{generator_forward.7} parent=5 // pred_region
      %s441 = ssub.s32 %s9, 2
      // Predicated region
      $region48: #{generator_forward.7} parent=46 // pred_check
        %p442 = pneg %p106
      $region49: #{generator_forward.7} parent=46 // pred_check_branch
        %444 = sbr.rel (%p442) target = $region51
      $region50: #{generator_forward.7} parent=46 // pred_region
        %p445 = scmp.lt.s32.totalorder %s15, 1
        %s446 = scalar_select %p445, %s15, 1
        %s447 = smul.addr %s446, 18
        %s448 = smul.addr %s447, 8
        %s449 = scalar_lea.vmem %s3, %s448
      $region51: #{generator_forward.7} parent=46 // pred_fallthru
        _
    $region47: #{generator_forward.7} parent=5 // pred_fallthru
      _
  $region6: #{generator_forward.7} parent=0 // loop_footer
    %s13 = sadd.s32 1, %s9
  $region7: #{generator_forward.7} parent=0 // loop_footer_branch
    %8 = sbr.rel target = $region3
  $region8: #{generator_forward.7} parent=0 // loop_exit
    _

</llo_original>
